<compile_context>
chip_gen: v7x
topology: tpu7x:2x2x1
jax: 0.10.0
libtpu: 0.0.40
codegen_flags: <defaults>
</compile_context>

<pallas_src>
import jax
import jax.numpy as jnp
from jax.experimental import pallas as pl
from jax.experimental.pallas import tpu as pltpu

IN_FEATURES = 20
OUT_FEATURES = 2


def _round_up(x, m):
    return (x + m - 1) // m * m


def linear_kernel(x_ref, w_ref, b_ref, o_ref):
    # x_ref: (TB, 20)  batch tile (batch rows on sublanes, features on lanes)
    # w_ref: (2, 20)   PyTorch-layout weight, resident (constant index_map)
    # b_ref: (1, 2)    bias row, resident
    # o_ref: (TB, 2)   output tile, written straight into the (B, 2) result
    x = x_ref[...]
    w = w_ref[...]
    # (TB, 2) = x @ W^T : contract the feature (last) dim of both operands.
    # x is the streamed MXU operand; only the tiny weight is staged transposed.
    acc = jax.lax.dot_general(
        x, w,
        dimension_numbers=(((1,), (1,)), ((), ())),
        preferred_element_type=jnp.float32,
    )
    o_ref[...] = (acc + b_ref[...]).astype(o_ref.dtype)


def mymodel_forward(x, w, b, *, block_batch=8192, min_grid_steps=4):
    """out = x @ w.T + b  (PyTorch nn.Linear(20, 2) semantics).

    x: (B, 20) f32, w: (2, 20) f32 (PyTorch layout), b: (2,) f32 -> (B, 2) f32.
    """
    B = x.shape[0]
    # Batch tile: multiple of 128 (sublane/lane alignment), capped at
    # block_batch, and small enough that the grid has >= min_grid_steps steps
    # whenever B allows it (keeps the pipeline busy and feeds both v7x cores).
    tb = max(128, _round_up(pl.cdiv(B, min_grid_steps), 128))
    tb = min(tb, _round_up(block_batch, 128))
    grid = pl.cdiv(B, tb)          # ragged last block; no jnp.pad pass over x
    bias2d = b.reshape(1, OUT_FEATURES)

    out = pl.pallas_call(
        linear_kernel,
        out_shape=jax.ShapeDtypeStruct((B, OUT_FEATURES), x.dtype),
        grid_spec=pltpu.PrefetchScalarGridSpec(
            num_scalar_prefetch=0,
            grid=(grid,),
            in_specs=[
                pl.BlockSpec((tb, IN_FEATURES), lambda i: (i, 0)),
                pl.BlockSpec((OUT_FEATURES, IN_FEATURES), lambda i: (0, 0)),
                pl.BlockSpec((1, OUT_FEATURES), lambda i: (0, 0)),
            ],
            out_specs=pl.BlockSpec((tb, OUT_FEATURES), lambda i: (i, 0)),
        ),
        compiler_params=pltpu.CompilerParams(
            # Batch tiles are independent -> shard grid steps across both
            # TensorCores on v7x; harmless on v5e/v6e.
            dimension_semantics=("parallel",),
            # Covers the double-buffered tiles on every generation (v5e's
            # default scoped limit is only 16 MiB).
            vmem_limit_bytes=32 * 1024 * 1024,
        ),
    )(x, w, bias2d)
    return out


def init_params(key):
    # Mimic torch.nn.Linear default init: U(-1/sqrt(in), 1/sqrt(in)).
    kw, kb = jax.random.split(key)
    bound = 1.0 / jnp.sqrt(jnp.float32(IN_FEATURES))
    w = jax.random.uniform(kw, (OUT_FEATURES, IN_FEATURES), jnp.float32,
                           minval=-bound, maxval=bound)
    b = jax.random.uniform(kb, (OUT_FEATURES,), jnp.float32,
                           minval=-bound, maxval=bound)
    return w, b


if __name__ == "__main__":
    key = jax.random.PRNGKey(0)
    kx, kp = jax.random.split(key)
    # Batch that is not a multiple of 128 and not a multiple of the tile size:
    # exercises the multi-step grid (4 steps) and the ragged last block.
    B = 2050
    x = jax.random.normal(kx, (B, IN_FEATURES), jnp.float32)
    w, b = init_params(kp)

    out = mymodel_forward(x, w, b)
    jax.block_until_ready(out)

    ref = x @ w.T + b[None, :]
    assert out.shape == (B, OUT_FEATURES)
    max_err = float(jnp.max(jnp.abs(out - ref)))
    assert jnp.allclose(out, ref, atol=5e-3, rtol=5e-3), f"max abs err {max_err}"
    print("KERNEL_OK")
</pallas_src>

<mosaic_0001>
module attributes {stable_mosaic.version = 11 : i64} {
  func.func @linear_kernel(%arg0: i32, %arg1: memref<640x20xf32, #tpu.memory_space<vmem>>, %arg2: memref<2x20xf32, #tpu.memory_space<vmem>>, %arg3: memref<1x2xf32, #tpu.memory_space<vmem>>, %arg4: memref<640x2xf32, #tpu.memory_space<vmem>>) attributes {dimension_semantics = [#tpu.dimension_semantics<parallel>], iteration_bounds = array<i64: 4>, scalar_prefetch = 0 : i64, scratch_operands = 0 : i64, tpu.core_type = #tpu.core_type<tc>, window_params = [{transform_indices = @transform_0, window_bounds = array<i64: 640, 20>}, {pipeline_mode = #tpu.pipeline_mode<synchronous>, transform_indices = @transform_1, window_bounds = array<i64: 2, 20>}, {pipeline_mode = #tpu.pipeline_mode<synchronous>, transform_indices = @transform_2, window_bounds = array<i64: 1, 2>}, {transform_indices = @transform_3, window_bounds = array<i64: 640, 2>}]} {
    %c0 = arith.constant 0 : index
    %c0_0 = arith.constant 0 : index
    %0 = vector.load %arg1[%c0, %c0_0] : memref<640x20xf32, #tpu.memory_space<vmem>>, vector<640x20xf32>
    %c0_1 = arith.constant 0 : index
    %c0_2 = arith.constant 0 : index
    %1 = vector.load %arg2[%c0_1, %c0_2] : memref<2x20xf32, #tpu.memory_space<vmem>>, vector<2x20xf32>
    %cst = arith.constant dense<0.000000e+00> : vector<640x2xf32>
    %2 = tpu.matmul %0, %1, %cst {dimension_numbers = #tpu.dot_dimension_numbers<[1], [1], [0], [0], [0, 0, 1, 0], [], []>} : vector<640x20xf32>, vector<2x20xf32>, vector<640x2xf32> -> vector<640x2xf32>
    %c0_3 = arith.constant 0 : index
    %c0_4 = arith.constant 0 : index
    %3 = vector.load %arg3[%c0_3, %c0_4] : memref<1x2xf32, #tpu.memory_space<vmem>>, vector<1x2xf32>
    %4 = vector.broadcast %3 : vector<1x2xf32> to vector<640x2xf32>
    %5 = arith.addf %2, %4 : vector<640x2xf32>
    %c0_5 = arith.constant 0 : index
    %c0_6 = arith.constant 0 : index
    %6 = vector.load %arg4[%c0_5, %c0_6] : memref<640x2xf32, #tpu.memory_space<vmem>>, vector<640x2xf32>
    tpu.vector_store %arg4[%c0_5, %c0_6], %5 {strides = array<i32>} : memref<640x2xf32, #tpu.memory_space<vmem>>, vector<640x2xf32>,
    return
  }
  func.func @transform_0(%arg0: i32) -> (i32, i32) {
    %c0_i32 = arith.constant 0 : i32
    %c0_i32_0 = arith.constant 0 : i32
    return %arg0, %c0_i32 : i32, i32
  }
  func.func @transform_1(%arg0: i32) -> (i32, i32) {
    %c0_i32 = arith.constant 0 : i32
    %c0_i32_0 = arith.constant 0 : i32
    %c0_i32_1 = arith.constant 0 : i32
    return %c0_i32, %c0_i32_0 : i32, i32
  }
  func.func @transform_2(%arg0: i32) -> (i32, i32) {
    %c0_i32 = arith.constant 0 : i32
    %c0_i32_0 = arith.constant 0 : i32
    %c0_i32_1 = arith.constant 0 : i32
    return %c0_i32, %c0_i32_0 : i32, i32
  }
  func.func @transform_3(%arg0: i32) -> (i32, i32) {
    %c0_i32 = arith.constant 0 : i32
    %c0_i32_0 = arith.constant 0 : i32
    return %arg0, %c0_i32 : i32, i32
  }
}

</mosaic_0001>

<llo_original>
// kernel: tpu_custom_call.1
$region0: #{tpu_custom_call.1}
  #allocation0 [shape = 'u32[]', space=smem, size = 0x4, offset = 0x4, fixed_abs, tag = 'smem constant byte address 0x4 - core index']
  #allocation1 [shape = 'u32[144,128]{1,0:T(1,128)}', space=vmem, size = 0x12000, scoped, tag = 'internal scratch']
  %s0 = inlined_call_operand.vmem [shape: f32[2050,20], index: 0, kind: input, shape index: {}]
  %s1 = inlined_call_operand.vmem [shape: f32[2,20], index: 1, kind: input, shape index: {}]
  %s2 = inlined_call_operand.vmem [shape: f32[1,2], index: 2, kind: input, shape index: {}]
  %s3 = inlined_call_operand.vmem [shape: f32[2050,2], index: 3, kind: output, shape index: {}]
  %s4 = sld [smem:[#allocation0]]
  $region93: #{tpu_custom_call.1} parent=0
    _
  %s6 = ssub.s32 1, %s4
  %s7 = scalar_select 0, %s6, %s4
  $region1: #{tpu_custom_call.1} parent=0
    #allocation2 [shape = 'u8[655360]{0}', space=vmem, size = 0xa0000, scoped, tag = 'output window, operand 0']
    loop: start=0, step=1, limit=6
    $region2: #{tpu_custom_call.1} parent=1 // loop_pre_header
      _
    $region3: #{tpu_custom_call.1} parent=1 // loop_header
      %s9 = sphi 0, %s13
      %p10 = scmp.ge.s32.totalorder %s9, 6
      %s19 = sphi 0, %s21
      %s22 = sphi 0, %s19
      %s23 = sphi 0, %s22
      %s39 = sphi 0, %s23
      %s43 = sphi 0, %s43
      %s45 = sphi 0, %s43
      %s46 = sphi 0, %s45
      %s60 = sphi 0, %s46
      %s64 = sphi 0, %s64
      %s66 = sphi 0, %s64
      %s67 = sphi 0, %s66
      %s81 = sphi 0, %s67
      %s87 = sphi 0, %s89
      %s90 = sphi 0, %s87
      %s91 = sphi 0, %s90
      %s107 = sphi 0, %s91
    $region4: #{tpu_custom_call.1} parent=1 // loop_header_branch
      %12 = sbr.rel (%p10) target = $region8
    $region5: #{tpu_custom_call.1} parent=1 // loop_body
      %s14 = ssub.s32 %s9, 1
      %s15 = ssub.s32 %s9, 2
      %s16 = sadd.s32 %s9, 1
      %s17 = ssub.s32 %s9, %s16
      %p18 = scmp.eq.s32.totalorder %s17, 0
      %s20 = sadd.s32 %s19, 1
      %s21 = scalar_select %p18, %s19, %s20
      %p24 = pneg %p18
      %p25 = scmp.eq.s32.totalorder %s9, 3
      %p26 = por %p24, %p25
      %p27 = scmp.ne.s32.totalorder %s19, %s22
      %p28 = scmp.eq.s32.totalorder %s9, 0
      %p29 = por %p27, %p28
      %p30 = scmp.ne.s32.totalorder %s19, %s22
      %p31 = scmp.eq.s32.totalorder %s14, 3
      %p32 = por %p30, %p31
      %p33 = scmp.ne.s32.totalorder %s22, %s23
      %p34 = scmp.eq.s32.totalorder %s14, 0
      %p35 = por %p33, %p34
      %p36 = scmp.ne.s32.totalorder %s22, %s23
      %p37 = scmp.eq.s32.totalorder %s15, 3
      %p38 = por %p36, %p37
      %p40 = scmp.ne.s32.totalorder %s23, %s39
      %p41 = scmp.eq.s32.totalorder %s15, 0
      %p42 = por %p40, %p41
      %s44 = sadd.s32 %s43, 1
      %p47 = scmp.eq.s32.totalorder %s9, 3
      %p48 = scmp.ne.s32.totalorder %s43, %s45
      %p49 = scmp.eq.s32.totalorder %s9, 0
      %p50 = por %p48, %p49
      %p51 = scmp.ne.s32.totalorder %s43, %s45
      %p52 = scmp.eq.s32.totalorder %s14, 3
      %p53 = por %p51, %p52
      %p54 = scmp.ne.s32.totalorder %s45, %s46
      %p55 = scmp.eq.s32.totalorder %s14, 0
      %p56 = por %p54, %p55
      %p57 = scmp.ne.s32.totalorder %s45, %s46
      %p58 = scmp.eq.s32.totalorder %s15, 3
      %p59 = por %p57, %p58
      %p61 = scmp.ne.s32.totalorder %s46, %s60
      %p62 = scmp.eq.s32.totalorder %s15, 0
      %p63 = por %p61, %p62
      %s65 = sadd.s32 %s64, 1
      %p68 = scmp.eq.s32.totalorder %s9, 3
      %p69 = scmp.ne.s32.totalorder %s64, %s66
      %p70 = scmp.eq.s32.totalorder %s9, 0
      %p71 = por %p69, %p70
      %p72 = scmp.ne.s32.totalorder %s64, %s66
      %p73 = scmp.eq.s32.totalorder %s14, 3
      %p74 = por %p72, %p73
      %p75 = scmp.ne.s32.totalorder %s66, %s67
      %p76 = scmp.eq.s32.totalorder %s14, 0
      %p77 = por %p75, %p76
      %p78 = scmp.ne.s32.totalorder %s66, %s67
      %p79 = scmp.eq.s32.totalorder %s15, 3
      %p80 = por %p78, %p79
      %p82 = scmp.ne.s32.totalorder %s67, %s81
      %p83 = scmp.eq.s32.totalorder %s15, 0
      %p84 = por %p82, %p83
      %s85 = ssub.s32 %s9, %s16
      %p86 = scmp.eq.s32.totalorder %s85, 0
      %s88 = sadd.s32 %s87, 1
      %s89 = scalar_select %p86, %s87, %s88
      %p92 = pneg %p86
      %p93 = scmp.eq.s32.totalorder %s9, 3
      %p94 = por %p92, %p93
      %p95 = scmp.ne.s32.totalorder %s87, %s90
      %p96 = scmp.eq.s32.totalorder %s9, 0
      %p97 = por %p95, %p96
      %p98 = scmp.ne.s32.totalorder %s87, %s90
      %p99 = scmp.eq.s32.totalorder %s14, 3
      %p100 = por %p98, %p99
      %p101 = scmp.ne.s32.totalorder %s90, %s91
      %p102 = scmp.eq.s32.totalorder %s14, 0
      %p103 = por %p101, %p102
      %p104 = scmp.ne.s32.totalorder %s90, %s91
      %p105 = scmp.eq.s32.totalorder %s15, 3
      %p106 = por %p104, %p105
      %p108 = scmp.ne.s32.totalorder %s91, %s107
      %p109 = scmp.eq.s32.totalorder %s15, 0
      %p110 = por %p108, %p109
      %p111 = scmp.le.s32.totalorder 1, %s9
      %p112 = scmp.lt.s32.totalorder %s9, 5
      %p113 = pnand %p111, %p112
      %p114 = pneg %p113
      // Predicated region
      $region9: #{tpu_custom_call.1} parent=5 // pred_check
        _
      $region10: #{tpu_custom_call.1} parent=5 // pred_check_branch
        %116 = sbr.rel (%p113) target = $region12
      $region11: #{tpu_custom_call.1} parent=5 // pred_region
        %s117 = ssub.s32 %s9, 1
        // Predicated region
        $region13: #{tpu_custom_call.1} parent=11 // pred_check
          %p118 = pneg %p56
        $region14: #{tpu_custom_call.1} parent=11 // pred_check_branch
          %120 = sbr.rel (%p118) target = $region16
        $region15: #{tpu_custom_call.1} parent=11 // pred_region
          _
        $region16: #{tpu_custom_call.1} parent=11 // pred_fallthru
          _
        // Predicated region
        $region17: #{tpu_custom_call.1} parent=11 // pred_check
          %p121 = pneg %p77
        $region18: #{tpu_custom_call.1} parent=11 // pred_check_branch
          %123 = sbr.rel (%p121) target = $region20
        $region19: #{tpu_custom_call.1} parent=11 // pred_region
          _
        $region20: #{tpu_custom_call.1} parent=11 // pred_fallthru
          _
      $region12: #{tpu_custom_call.1} parent=5 // pred_fallthru
        _
      %p124 = scmp.lt.s32.totalorder %s9, 4
      // Predicated region
      $region21: #{tpu_custom_call.1} parent=5 // pred_check
        %p125 = pneg %p124
      $region22: #{tpu_custom_call.1} parent=5 // pred_check_branch
        %127 = sbr.rel (%p125) target = $region24
      $region23: #{tpu_custom_call.1} parent=5 // pred_region
        // Predicated region
        $region25: #{tpu_custom_call.1} parent=23 // pred_check
          %p128 = pneg %p29
        $region26: #{tpu_custom_call.1} parent=23 // pred_check_branch
          %130 = sbr.rel (%p128) target = $region28
        $region27: #{tpu_custom_call.1} parent=23 // pred_region
          %s131 = smul.u32 80, %s9
          %s132 = ssub.s32 257, %s131
          %p133 = scmp.lt.s32.totalorder %s132, 80
          %s134 = scalar_select %p133, %s132, 80
          %s135 = smul.u32 128, %s134
          %p136 = scmp.lt.s32.totalorder %s131, 256
          %s137 = scalar_select %p136, %s131, 256
          %s138 = smul.addr %s137, 8
          %s139 = scalar_lea.vmem %s0, %s138
          %s140 = smul.u32 80, %s9
          %s141 = ssub.s32 257, %s140
          %p142 = scmp.lt.s32.totalorder %s141, 80
          %s143 = scalar_select %p142, %s141, 80
          %s144 = smul.u32 128, %s143
        $region28: #{tpu_custom_call.1} parent=23 // pred_fallthru
          _
      $region24: #{tpu_custom_call.1} parent=5 // pred_fallthru
        _
      %p145 = scmp.le.s32.totalorder 1, %s9
      %p146 = scmp.lt.s32.totalorder %s9, 5
      %p147 = pnand %p145, %p146
      %p148 = pneg %p147
      // Predicated region
      $region29: #{tpu_custom_call.1} parent=5 // pred_check
        _
      $region30: #{tpu_custom_call.1} parent=5 // pred_check_branch
        %150 = sbr.rel (%p147) target = $region32
      $region31: #{tpu_custom_call.1} parent=5 // pred_region
        %s151 = ssub.s32 %s9, 1
        %s152 = smul.u32 80, %s14
        %s153 = ssub.s32 257, %s152
        %p154 = scmp.lt.s32.totalorder %s153, 80
        %s155 = scalar_select %p154, %s153, 80
        %s156 = smul.u32 128, %s155
        %p157 = scmp.lt.s32.totalorder %s152, 256
        %s158 = scalar_select %p157, %s152, 256
        %s159 = smul.addr %s158, 8
        %s160 = scalar_lea.vmem %s0, %s159
        %p161 = pneg %p35
        %p162 = pneg %p32
        %p163 = pneg %p56
        %p164 = pneg %p53
        %p165 = pneg %p77
        %p166 = pneg %p74
        %p167 = pneg %p103
        %p168 = pneg %p100
        %s169 = sand.u32 %s90, 1
        %s170 = sand.u32 %s90, 1
        %s171 = smul.addr %s170, 640
        %s172 = scalar_lea.vmem [#allocation2], %s171
        %s173 = smul.u32 80, %s14
        %s174 = ssub.s32 257, %s173
        %p175 = scmp.lt.s32.totalorder %s174, 80
        %s176 = scalar_select %p175, %s174, 80
        %s177 = smul.u32 128, %s176
        %p178 = scmp.lt.s32.totalorder %s173, 256
        %s179 = scalar_select %p178, %s173, 256
        %s180 = smul.addr %s179, 8
        %s181 = scalar_lea.vmem %s0, %s180
        %s182 = smul.u32 80, %s14
        %s183 = ssub.s32 257, %s182
        %p184 = scmp.lt.s32.totalorder %s183, 80
        %s185 = scalar_select %p184, %s183, 80
        %s186 = smul.u32 128, %s185
        %s187 = smul.u32 80, %s14
        %s188 = ssub.s32 257, %s187
        %p189 = scmp.lt.s32.totalorder %s188, 80
        %s190 = scalar_select %p189, %s188, 80
        %s191 = smul.u32 128, %s190
        %v192 = vld [vmem:[%s181] sm:$0xff]
        %v193 = vld [vmem:[%s181 + $0x8] sm:$0xff]
        %v194 = vld [vmem:[%s181 + $0x10] sm:$0xff]
        %v195 = vld [vmem:[%s181 + $0x18] sm:$0xff]
        %v196 = vld [vmem:[%s181 + $0x20] sm:$0xff]
        %v197 = vld [vmem:[%s181 + $0x28] sm:$0xff]
        %v198 = vld [vmem:[%s181 + $0x30] sm:$0xff]
        %v199 = vld [vmem:[%s181 + $0x38] sm:$0xff]
        %v200 = vld [vmem:[%s181 + $0x40] sm:$0xff]
        %v201 = vld [vmem:[%s181 + $0x48] sm:$0xff]
        %v202 = vld [vmem:[%s181 + $0x50] sm:$0xff]
        %v203 = vld [vmem:[%s181 + $0x58] sm:$0xff]
        %v204 = vld [vmem:[%s181 + $0x60] sm:$0xff]
        %v205 = vld [vmem:[%s181 + $0x68] sm:$0xff]
        %v206 = vld [vmem:[%s181 + $0x70] sm:$0xff]
        %v207 = vld [vmem:[%s181 + $0x78] sm:$0xff]
        %v208 = vld [vmem:[%s181 + $0x80] sm:$0xff]
        %v209 = vld [vmem:[%s181 + $0x88] sm:$0xff]
        %v210 = vld [vmem:[%s181 + $0x90] sm:$0xff]
        %v211 = vld [vmem:[%s181 + $0x98] sm:$0xff]
        %v212 = vld [vmem:[%s181 + $0xa0] sm:$0xff]
        %v213 = vld [vmem:[%s181 + $0xa8] sm:$0xff]
        %v214 = vld [vmem:[%s181 + $0xb0] sm:$0xff]
        %v215 = vld [vmem:[%s181 + $0xb8] sm:$0xff]
        %v216 = vld [vmem:[%s181 + $0xc0] sm:$0xff]
        %v217 = vld [vmem:[%s181 + $0xc8] sm:$0xff]
        %v218 = vld [vmem:[%s181 + $0xd0] sm:$0xff]
        %v219 = vld [vmem:[%s181 + $0xd8] sm:$0xff]
        %v220 = vld [vmem:[%s181 + $0xe0] sm:$0xff]
        %v221 = vld [vmem:[%s181 + $0xe8] sm:$0xff]
        %v222 = vld [vmem:[%s181 + $0xf0] sm:$0xff]
        %v223 = vld [vmem:[%s181 + $0xf8] sm:$0xff]
        %v224 = vld [vmem:[%s181 + $0x100] sm:$0xff]
        %v225 = vld [vmem:[%s181 + $0x108] sm:$0xff]
        %v226 = vld [vmem:[%s181 + $0x110] sm:$0xff]
        %v227 = vld [vmem:[%s181 + $0x118] sm:$0xff]
        %v228 = vld [vmem:[%s181 + $0x120] sm:$0xff]
        %v229 = vld [vmem:[%s181 + $0x128] sm:$0xff]
        %v230 = vld [vmem:[%s181 + $0x130] sm:$0xff]
        %v231 = vld [vmem:[%s181 + $0x138] sm:$0xff]
        %v232 = vld [vmem:[%s181 + $0x140] sm:$0xff]
        %v233 = vld [vmem:[%s181 + $0x148] sm:$0xff]
        %v234 = vld [vmem:[%s181 + $0x150] sm:$0xff]
        %v235 = vld [vmem:[%s181 + $0x158] sm:$0xff]
        %v236 = vld [vmem:[%s181 + $0x160] sm:$0xff]
        %v237 = vld [vmem:[%s181 + $0x168] sm:$0xff]
        %v238 = vld [vmem:[%s181 + $0x170] sm:$0xff]
        %v239 = vld [vmem:[%s181 + $0x178] sm:$0xff]
        %v240 = vld [vmem:[%s181 + $0x180] sm:$0xff]
        %v241 = vld [vmem:[%s181 + $0x188] sm:$0xff]
        %v242 = vld [vmem:[%s181 + $0x190] sm:$0xff]
        %v243 = vld [vmem:[%s181 + $0x198] sm:$0xff]
        %v244 = vld [vmem:[%s181 + $0x1a0] sm:$0xff]
        %v245 = vld [vmem:[%s181 + $0x1a8] sm:$0xff]
        %v246 = vld [vmem:[%s181 + $0x1b0] sm:$0xff]
        %v247 = vld [vmem:[%s181 + $0x1b8] sm:$0xff]
        %v248 = vld [vmem:[%s181 + $0x1c0] sm:$0xff]
        %v249 = vld [vmem:[%s181 + $0x1c8] sm:$0xff]
        %v250 = vld [vmem:[%s181 + $0x1d0] sm:$0xff]
        %v251 = vld [vmem:[%s181 + $0x1d8] sm:$0xff]
        %v252 = vld [vmem:[%s181 + $0x1e0] sm:$0xff]
        %v253 = vld [vmem:[%s181 + $0x1e8] sm:$0xff]
        %v254 = vld [vmem:[%s181 + $0x1f0] sm:$0xff]
        %v255 = vld [vmem:[%s181 + $0x1f8] sm:$0xff]
        %v256 = vld [vmem:[%s181 + $0x200] sm:$0xff]
        %v257 = vld [vmem:[%s181 + $0x208] sm:$0xff]
        %v258 = vld [vmem:[%s181 + $0x210] sm:$0xff]
        %v259 = vld [vmem:[%s181 + $0x218] sm:$0xff]
        %v260 = vld [vmem:[%s181 + $0x220] sm:$0xff]
        %v261 = vld [vmem:[%s181 + $0x228] sm:$0xff]
        %v262 = vld [vmem:[%s181 + $0x230] sm:$0xff]
        %v263 = vld [vmem:[%s181 + $0x238] sm:$0xff]
        %v264 = vld [vmem:[%s181 + $0x240] sm:$0xff]
        %v265 = vld [vmem:[%s181 + $0x248] sm:$0xff]
        %v266 = vld [vmem:[%s181 + $0x250] sm:$0xff]
        %v267 = vld [vmem:[%s181 + $0x258] sm:$0xff]
        %v268 = vld [vmem:[%s181 + $0x260] sm:$0xff]
        %v269 = vld [vmem:[%s181 + $0x268] sm:$0xff]
        %v270 = vld [vmem:[%s181 + $0x270] sm:$0xff]
        %v271 = vld [vmem:[%s181 + $0x278] sm:$0xff]
        %v272 = vld [vmem:[%s1] sm:$0x3]
        %v273 = vld [vmem:[%s2] sm:$0x1]
        %v275 = vlaneseq
        %v276 = vshrl.u32 %v275, 7
        %v277 = vsub.s32 0, %v276
        %v278 = vrot.slane %v273, %v277
        %vm280 = vcmask 162816
        %v282 = vsel %vm280, %v192, 0
        %v285 = vsel %vm280, %v193, 0
        %v288 = vsel %vm280, %v194, 0
        %v291 = vsel %vm280, %v195, 0
        %v294 = vsel %vm280, %v196, 0
        %v297 = vsel %vm280, %v197, 0
        %v300 = vsel %vm280, %v198, 0
        %v303 = vsel %vm280, %v199, 0
        %v306 = vsel %vm280, %v200, 0
        %v309 = vsel %vm280, %v201, 0
        %v312 = vsel %vm280, %v202, 0
        %v315 = vsel %vm280, %v203, 0
        %v318 = vsel %vm280, %v204, 0
        %v321 = vsel %vm280, %v205, 0
        %v324 = vsel %vm280, %v206, 0
        %v327 = vsel %vm280, %v207, 0
        %v330 = vsel %vm280, %v208, 0
        %v333 = vsel %vm280, %v209, 0
        %v336 = vsel %vm280, %v210, 0
        %v339 = vsel %vm280, %v211, 0
        %v342 = vsel %vm280, %v212, 0
        %v345 = vsel %vm280, %v213, 0
        %v348 = vsel %vm280, %v214, 0
        %v351 = vsel %vm280, %v215, 0
        %v354 = vsel %vm280, %v216, 0
        %v357 = vsel %vm280, %v217, 0
        %v360 = vsel %vm280, %v218, 0
        %v363 = vsel %vm280, %v219, 0
        %v366 = vsel %vm280, %v220, 0
        %v369 = vsel %vm280, %v221, 0
        %v372 = vsel %vm280, %v222, 0
        %v375 = vsel %vm280, %v223, 0
        %v378 = vsel %vm280, %v224, 0
        %v381 = vsel %vm280, %v225, 0
        %v384 = vsel %vm280, %v226, 0
        %v387 = vsel %vm280, %v227, 0
        %v390 = vsel %vm280, %v228, 0
        %v393 = vsel %vm280, %v229, 0
        %v396 = vsel %vm280, %v230, 0
        %v399 = vsel %vm280, %v231, 0
        %v402 = vsel %vm280, %v232, 0
        %v405 = vsel %vm280, %v233, 0
        %v408 = vsel %vm280, %v234, 0
        %v411 = vsel %vm280, %v235, 0
        %v414 = vsel %vm280, %v236, 0
        %v417 = vsel %vm280, %v237, 0
        %v420 = vsel %vm280, %v238, 0
        %v423 = vsel %vm280, %v239, 0
        %v426 = vsel %vm280, %v240, 0
        %v429 = vsel %vm280, %v241, 0
        %v432 = vsel %vm280, %v242, 0
        %v435 = vsel %vm280, %v243, 0
        %v438 = vsel %vm280, %v244, 0
        %v441 = vsel %vm280, %v245, 0
        %v444 = vsel %vm280, %v246, 0
        %v447 = vsel %vm280, %v247, 0
        %v450 = vsel %vm280, %v248, 0
        %v453 = vsel %vm280, %v249, 0
        %v456 = vsel %vm280, %v250, 0
        %v459 = vsel %vm280, %v251, 0
        %v462 = vsel %vm280, %v252, 0
        %v465 = vsel %vm280, %v253, 0
        %v468 = vsel %vm280, %v254, 0
        %v471 = vsel %vm280, %v255, 0
        %v474 = vsel %vm280, %v256, 0
        %v477 = vsel %vm280, %v257, 0
        %v480 = vsel %vm280, %v258, 0
        %v483 = vsel %vm280, %v259, 0
        %v486 = vsel %vm280, %v260, 0
        %v489 = vsel %vm280, %v261, 0
        %v492 = vsel %vm280, %v262, 0
        %v495 = vsel %vm280, %v263, 0
        %v498 = vsel %vm280, %v264, 0
        %v501 = vsel %vm280, %v265, 0
        %v504 = vsel %vm280, %v266, 0
        %v507 = vsel %vm280, %v267, 0
        %v510 = vsel %vm280, %v268, 0
        %v513 = vsel %vm280, %v269, 0
        %v516 = vsel %vm280, %v270, 0
        %v519 = vsel %vm280, %v271, 0
        %v522 = vsel %vm280, %v272, 0
        %524 = vmatprep.subr.mxu0 0.0
        %525 = vmatpush1.xpose.msra.mxu0 %v522
        %526 = vmatprep.subr.mxu0 0.0
        %527 = vmatpush1.xpose.msra.mxu0 0.0
        %528 = vmatprep.subr.mxu0 0.0
        %529 = vmatpush1.xpose.msra.mxu0 0.0
        %530 = vmatprep.subr.mxu0 0.0
        %531 = vmatpush1.xpose.msra.mxu0 0.0
        %532 = vmatprep.subr.mxu0 0.0
        %533 = vmatpush1.xpose.msra.mxu0 0.0
        %534 = vmatprep.subr.mxu0 0.0
        %535 = vmatpush1.xpose.msra.mxu0 0.0
        %536 = vmatprep.subr.mxu0 0.0
        %537 = vmatpush1.xpose.msra.mxu0 0.0
        %538 = vmatprep.subr.mxu0 0.0
        %539 = vmatpush1.xpose.msra.mxu0 0.0
        %540 = vmatprep.subr.mxu0 0.0
        %541 = vmatpush1.xpose.msra.mxu0 0.0
        %542 = vmatprep.subr.mxu0 0.0
        %543 = vmatpush1.xpose.msra.mxu0 0.0
        %544 = vmatprep.subr.mxu0 0.0
        %545 = vmatpush1.xpose.msra.mxu0 0.0
        %546 = vmatprep.subr.mxu0 0.0
        %547 = vmatpush1.xpose.msra.mxu0 0.0
        %548 = vmatprep.subr.mxu0 0.0
        %549 = vmatpush1.xpose.msra.mxu0 0.0
        %550 = vmatprep.subr.mxu0 0.0
        %551 = vmatpush1.xpose.msra.mxu0 0.0
        %552 = vmatprep.subr.mxu0 0.0
        %553 = vmatpush1.xpose.msra.mxu0 0.0
        %554 = vmatprep.subr.mxu0 0.0
        %555 = vmatpush1.xpose.msra.mxu0 0.0
        %556 = vmatprep.subr.mxu0 0.0
        %557 = vmatpush1.xpose.msra.mxu0 0.0
        %558 = vmatprep.subr.mxu0 0.0
        %559 = vmatpush1.xpose.msra.mxu0 0.0
        %560 = vmatprep.subr.mxu0 0.0
        %561 = vmatpush1.xpose.msra.mxu0 0.0
        %562 = vmatprep.subr.mxu0 0.0
        %563 = vmatpush1.xpose.msra.mxu0 0.0
        %564 = vmatprep.subr.mxu0 0.0
        %565 = vmatpush1.xpose.msra.mxu0 0.0
        %566 = vmatprep.subr.mxu0 0.0
        %567 = vmatpush1.xpose.msra.mxu0 0.0
        %568 = vmatprep.subr.mxu0 0.0
        %569 = vmatpush1.xpose.msra.mxu0 0.0
        %570 = vmatprep.subr.mxu0 0.0
        %571 = vmatpush1.xpose.msra.mxu0 0.0
        %572 = vmatprep.subr.mxu0 0.0
        %573 = vmatpush1.xpose.msra.mxu0 0.0
        %574 = vmatprep.subr.mxu0 0.0
        %575 = vmatpush1.xpose.msra.mxu0 0.0
        %576 = vmatprep.subr.mxu0 0.0
        %577 = vmatpush1.xpose.msra.mxu0 0.0
        %578 = vmatprep.subr.mxu0 0.0
        %579 = vmatpush1.xpose.msra.mxu0 0.0
        %580 = vmatprep.subr.mxu0 0.0
        %581 = vmatpush1.xpose.msra.mxu0 0.0
        %582 = vmatprep.subr.mxu0 0.0
        %583 = vmatpush1.xpose.msra.mxu0 0.0
        %584 = vmatprep.subr.mxu0 0.0
        %585 = vmatpush1.xpose.msra.mxu0 0.0
        %586 = vmatprep.subr.mxu0 0.0
        %587 = vmatpush1.xpose.msra.mxu0 0.0
        %588 = vmatprep.mubr.f32.mxu0 0.0
        %589 = vmatmul.mubr.f32.gmra.mrb[0].mxu0 %v282
        %v590 = vpop.f32.mrb[0].mxu0
        %v591 = vadd.f32 %v278, %v590
        %v592 = vpop.f32.mrb[0].mxu0
        %593 = vmatprep.mubr.f32.mxu0 0.0
        %594 = vmatmul.mubr.f32.gmra.mrb[0].mxu0 %v285
        %v595 = vpop.f32.mrb[0].mxu0
        %v596 = vadd.f32 %v278, %v595
        %v597 = vpop.f32.mrb[0].mxu0
        %598 = vmatprep.mubr.f32.mxu0 0.0
        %599 = vmatmul.mubr.f32.gmra.mrb[0].mxu0 %v288
        %v600 = vpop.f32.mrb[0].mxu0
        %v601 = vadd.f32 %v278, %v600
        %v602 = vpop.f32.mrb[0].mxu0
        %603 = vmatprep.mubr.f32.mxu0 0.0
        %604 = vmatmul.mubr.f32.gmra.mrb[0].mxu0 %v291
        %v605 = vpop.f32.mrb[0].mxu0
        %v606 = vadd.f32 %v278, %v605
        %v607 = vpop.f32.mrb[0].mxu0
        %608 = vmatprep.mubr.f32.mxu0 0.0
        %609 = vmatmul.mubr.f32.gmra.mrb[0].mxu0 %v294
        %v610 = vpop.f32.mrb[0].mxu0
        %v611 = vadd.f32 %v278, %v610
        %v612 = vpop.f32.mrb[0].mxu0
        %613 = vmatprep.mubr.f32.mxu0 0.0
        %614 = vmatmul.mubr.f32.gmra.mrb[0].mxu0 %v297
        %v615 = vpop.f32.mrb[0].mxu0
        %v616 = vadd.f32 %v278, %v615
        %v617 = vpop.f32.mrb[0].mxu0
        %618 = vmatprep.mubr.f32.mxu0 0.0
        %619 = vmatmul.mubr.f32.gmra.mrb[0].mxu0 %v300
        %v620 = vpop.f32.mrb[0].mxu0
        %v621 = vadd.f32 %v278, %v620
        %v622 = vpop.f32.mrb[0].mxu0
        %623 = vmatprep.mubr.f32.mxu0 0.0
        %624 = vmatmul.mubr.f32.gmra.mrb[0].mxu0 %v303
        %v625 = vpop.f32.mrb[0].mxu0
        %v626 = vadd.f32 %v278, %v625
        %v627 = vpop.f32.mrb[0].mxu0
        %628 = vmatprep.mubr.f32.mxu0 0.0
        %629 = vmatmul.mubr.f32.gmra.mrb[0].mxu0 %v306
        %v630 = vpop.f32.mrb[0].mxu0
        %v631 = vadd.f32 %v278, %v630
        %v632 = vpop.f32.mrb[0].mxu0
        %633 = vmatprep.mubr.f32.mxu0 0.0
        %634 = vmatmul.mubr.f32.gmra.mrb[0].mxu0 %v309
        %v635 = vpop.f32.mrb[0].mxu0
        %v636 = vadd.f32 %v278, %v635
        %v637 = vpop.f32.mrb[0].mxu0
        %638 = vmatprep.mubr.f32.mxu0 0.0
        %639 = vmatmul.mubr.f32.gmra.mrb[0].mxu0 %v312
        %v640 = vpop.f32.mrb[0].mxu0
        %v641 = vadd.f32 %v278, %v640
        %v642 = vpop.f32.mrb[0].mxu0
        %643 = vmatprep.mubr.f32.mxu0 0.0
        %644 = vmatmul.mubr.f32.gmra.mrb[0].mxu0 %v315
        %v645 = vpop.f32.mrb[0].mxu0
        %v646 = vadd.f32 %v278, %v645
        %v647 = vpop.f32.mrb[0].mxu0
        %648 = vmatprep.mubr.f32.mxu0 0.0
        %649 = vmatmul.mubr.f32.gmra.mrb[0].mxu0 %v318
        %v650 = vpop.f32.mrb[0].mxu0
        %v651 = vadd.f32 %v278, %v650
        %v652 = vpop.f32.mrb[0].mxu0
        %653 = vmatprep.mubr.f32.mxu0 0.0
        %654 = vmatmul.mubr.f32.gmra.mrb[0].mxu0 %v321
        %v655 = vpop.f32.mrb[0].mxu0
        %v656 = vadd.f32 %v278, %v655
        %v657 = vpop.f32.mrb[0].mxu0
        %658 = vmatprep.mubr.f32.mxu0 0.0
        %659 = vmatmul.mubr.f32.gmra.mrb[0].mxu0 %v324
        %v660 = vpop.f32.mrb[0].mxu0
        %v661 = vadd.f32 %v278, %v660
        %v662 = vpop.f32.mrb[0].mxu0
        %663 = vmatprep.mubr.f32.mxu0 0.0
        %664 = vmatmul.mubr.f32.gmra.mrb[0].mxu0 %v327
        %v665 = vpop.f32.mrb[0].mxu0
        %v666 = vadd.f32 %v278, %v665
        %v667 = vpop.f32.mrb[0].mxu0
        %668 = vmatprep.mubr.f32.mxu0 0.0
        %669 = vmatmul.mubr.f32.gmra.mrb[0].mxu0 %v330
        %v670 = vpop.f32.mrb[0].mxu0
        %v671 = vadd.f32 %v278, %v670
        %v672 = vpop.f32.mrb[0].mxu0
        %673 = vmatprep.mubr.f32.mxu0 0.0
        %674 = vmatmul.mubr.f32.gmra.mrb[0].mxu0 %v333
        %v675 = vpop.f32.mrb[0].mxu0
        %v676 = vadd.f32 %v278, %v675
        %v677 = vpop.f32.mrb[0].mxu0
        %678 = vmatprep.mubr.f32.mxu0 0.0
        %679 = vmatmul.mubr.f32.gmra.mrb[0].mxu0 %v336
        %v680 = vpop.f32.mrb[0].mxu0
        %v681 = vadd.f32 %v278, %v680
        %v682 = vpop.f32.mrb[0].mxu0
        %683 = vmatprep.mubr.f32.mxu0 0.0
        %684 = vmatmul.mubr.f32.gmra.mrb[0].mxu0 %v339
        %v685 = vpop.f32.mrb[0].mxu0
        %v686 = vadd.f32 %v278, %v685
        %v687 = vpop.f32.mrb[0].mxu0
        %688 = vmatprep.mubr.f32.mxu0 0.0
        %689 = vmatmul.mubr.f32.gmra.mrb[0].mxu0 %v342
        %v690 = vpop.f32.mrb[0].mxu0
        %v691 = vadd.f32 %v278, %v690
        %v692 = vpop.f32.mrb[0].mxu0
        %693 = vmatprep.mubr.f32.mxu0 0.0
        %694 = vmatmul.mubr.f32.gmra.mrb[0].mxu0 %v345
        %v695 = vpop.f32.mrb[0].mxu0
        %v696 = vadd.f32 %v278, %v695
        %v697 = vpop.f32.mrb[0].mxu0
        %698 = vmatprep.mubr.f32.mxu0 0.0
        %699 = vmatmul.mubr.f32.gmra.mrb[0].mxu0 %v348
        %v700 = vpop.f32.mrb[0].mxu0
        %v701 = vadd.f32 %v278, %v700
        %v702 = vpop.f32.mrb[0].mxu0
        %703 = vmatprep.mubr.f32.mxu0 0.0
        %704 = vmatmul.mubr.f32.gmra.mrb[0].mxu0 %v351
        %v705 = vpop.f32.mrb[0].mxu0
        %v706 = vadd.f32 %v278, %v705
        %v707 = vpop.f32.mrb[0].mxu0
        %708 = vmatprep.mubr.f32.mxu0 0.0
        %709 = vmatmul.mubr.f32.gmra.mrb[0].mxu0 %v354
        %v710 = vpop.f32.mrb[0].mxu0
        %v711 = vadd.f32 %v278, %v710
        %v712 = vpop.f32.mrb[0].mxu0
        %713 = vmatprep.mubr.f32.mxu0 0.0
        %714 = vmatmul.mubr.f32.gmra.mrb[0].mxu0 %v357
        %v715 = vpop.f32.mrb[0].mxu0
        %v716 = vadd.f32 %v278, %v715
        %v717 = vpop.f32.mrb[0].mxu0
        %718 = vmatprep.mubr.f32.mxu0 0.0
        %719 = vmatmul.mubr.f32.gmra.mrb[0].mxu0 %v360
        %v720 = vpop.f32.mrb[0].mxu0
        %v721 = vadd.f32 %v278, %v720
        %v722 = vpop.f32.mrb[0].mxu0
        %723 = vmatprep.mubr.f32.mxu0 0.0
        %724 = vmatmul.mubr.f32.gmra.mrb[0].mxu0 %v363
        %v725 = vpop.f32.mrb[0].mxu0
        %v726 = vadd.f32 %v278, %v725
        %v727 = vpop.f32.mrb[0].mxu0
        %728 = vmatprep.mubr.f32.mxu0 0.0
        %729 = vmatmul.mubr.f32.gmra.mrb[0].mxu0 %v366
        %v730 = vpop.f32.mrb[0].mxu0
        %v731 = vadd.f32 %v278, %v730
        %v732 = vpop.f32.mrb[0].mxu0
        %733 = vmatprep.mubr.f32.mxu0 0.0
        %734 = vmatmul.mubr.f32.gmra.mrb[0].mxu0 %v369
        %v735 = vpop.f32.mrb[0].mxu0
        %v736 = vadd.f32 %v278, %v735
        %v737 = vpop.f32.mrb[0].mxu0
        %738 = vmatprep.mubr.f32.mxu0 0.0
        %739 = vmatmul.mubr.f32.gmra.mrb[0].mxu0 %v372
        %v740 = vpop.f32.mrb[0].mxu0
        %v741 = vadd.f32 %v278, %v740
        %v742 = vpop.f32.mrb[0].mxu0
        %743 = vmatprep.mubr.f32.mxu0 0.0
        %744 = vmatmul.mubr.f32.gmra.mrb[0].mxu0 %v375
        %v745 = vpop.f32.mrb[0].mxu0
        %v746 = vadd.f32 %v278, %v745
        %v747 = vpop.f32.mrb[0].mxu0
        %748 = vmatprep.mubr.f32.mxu0 0.0
        %749 = vmatmul.mubr.f32.gmra.mrb[0].mxu0 %v378
        %v750 = vpop.f32.mrb[0].mxu0
        %v751 = vadd.f32 %v278, %v750
        %v752 = vpop.f32.mrb[0].mxu0
        %753 = vmatprep.mubr.f32.mxu0 0.0
        %754 = vmatmul.mubr.f32.gmra.mrb[0].mxu0 %v381
        %v755 = vpop.f32.mrb[0].mxu0
        %v756 = vadd.f32 %v278, %v755
        %v757 = vpop.f32.mrb[0].mxu0
        %758 = vmatprep.mubr.f32.mxu0 0.0
        %759 = vmatmul.mubr.f32.gmra.mrb[0].mxu0 %v384
        %v760 = vpop.f32.mrb[0].mxu0
        %v761 = vadd.f32 %v278, %v760
        %v762 = vpop.f32.mrb[0].mxu0
        %763 = vmatprep.mubr.f32.mxu0 0.0
        %764 = vmatmul.mubr.f32.gmra.mrb[0].mxu0 %v387
        %v765 = vpop.f32.mrb[0].mxu0
        %v766 = vadd.f32 %v278, %v765
        %v767 = vpop.f32.mrb[0].mxu0
        %768 = vmatprep.mubr.f32.mxu0 0.0
        %769 = vmatmul.mubr.f32.gmra.mrb[0].mxu0 %v390
        %v770 = vpop.f32.mrb[0].mxu0
        %v771 = vadd.f32 %v278, %v770
        %v772 = vpop.f32.mrb[0].mxu0
        %773 = vmatprep.mubr.f32.mxu0 0.0
        %774 = vmatmul.mubr.f32.gmra.mrb[0].mxu0 %v393
        %v775 = vpop.f32.mrb[0].mxu0
        %v776 = vadd.f32 %v278, %v775
        %v777 = vpop.f32.mrb[0].mxu0
        %778 = vmatprep.mubr.f32.mxu0 0.0
        %779 = vmatmul.mubr.f32.gmra.mrb[0].mxu0 %v396
        %v780 = vpop.f32.mrb[0].mxu0
        %v781 = vadd.f32 %v278, %v780
        %v782 = vpop.f32.mrb[0].mxu0
        %783 = vmatprep.mubr.f32.mxu0 0.0
        %784 = vmatmul.mubr.f32.gmra.mrb[0].mxu0 %v399
        %v785 = vpop.f32.mrb[0].mxu0
        %v786 = vadd.f32 %v278, %v785
        %v787 = vpop.f32.mrb[0].mxu0
        %788 = vmatprep.mubr.f32.mxu0 0.0
        %789 = vmatmul.mubr.f32.gmra.mrb[0].mxu0 %v402
        %v790 = vpop.f32.mrb[0].mxu0
        %v791 = vadd.f32 %v278, %v790
        %v792 = vpop.f32.mrb[0].mxu0
        %793 = vmatprep.mubr.f32.mxu0 0.0
        %794 = vmatmul.mubr.f32.gmra.mrb[0].mxu0 %v405
        %v795 = vpop.f32.mrb[0].mxu0
        %v796 = vadd.f32 %v278, %v795
        %v797 = vpop.f32.mrb[0].mxu0
        %798 = vmatprep.mubr.f32.mxu0 0.0
        %799 = vmatmul.mubr.f32.gmra.mrb[0].mxu0 %v408
        %v800 = vpop.f32.mrb[0].mxu0
        %v801 = vadd.f32 %v278, %v800
        %v802 = vpop.f32.mrb[0].mxu0
        %803 = vmatprep.mubr.f32.mxu0 0.0
        %804 = vmatmul.mubr.f32.gmra.mrb[0].mxu0 %v411
        %v805 = vpop.f32.mrb[0].mxu0
        %v806 = vadd.f32 %v278, %v805
        %v807 = vpop.f32.mrb[0].mxu0
        %808 = vmatprep.mubr.f32.mxu0 0.0
        %809 = vmatmul.mubr.f32.gmra.mrb[0].mxu0 %v414
        %v810 = vpop.f32.mrb[0].mxu0
        %v811 = vadd.f32 %v278, %v810
        %v812 = vpop.f32.mrb[0].mxu0
        %813 = vmatprep.mubr.f32.mxu0 0.0
        %814 = vmatmul.mubr.f32.gmra.mrb[0].mxu0 %v417
        %v815 = vpop.f32.mrb[0].mxu0
        %v816 = vadd.f32 %v278, %v815
        %v817 = vpop.f32.mrb[0].mxu0
        %818 = vmatprep.mubr.f32.mxu0 0.0
        %819 = vmatmul.mubr.f32.gmra.mrb[0].mxu0 %v420
        %v820 = vpop.f32.mrb[0].mxu0
        %v821 = vadd.f32 %v278, %v820
        %v822 = vpop.f32.mrb[0].mxu0
        %823 = vmatprep.mubr.f32.mxu0 0.0
        %824 = vmatmul.mubr.f32.gmra.mrb[0].mxu0 %v423
        %v825 = vpop.f32.mrb[0].mxu0
        %v826 = vadd.f32 %v278, %v825
        %v827 = vpop.f32.mrb[0].mxu0
        %828 = vmatprep.mubr.f32.mxu0 0.0
        %829 = vmatmul.mubr.f32.gmra.mrb[0].mxu0 %v426
        %v830 = vpop.f32.mrb[0].mxu0
        %v831 = vadd.f32 %v278, %v830
        %v832 = vpop.f32.mrb[0].mxu0
        %833 = vmatprep.mubr.f32.mxu0 0.0
        %834 = vmatmul.mubr.f32.gmra.mrb[0].mxu0 %v429
        %v835 = vpop.f32.mrb[0].mxu0
        %v836 = vadd.f32 %v278, %v835
        %v837 = vpop.f32.mrb[0].mxu0
        %838 = vmatprep.mubr.f32.mxu0 0.0
        %839 = vmatmul.mubr.f32.gmra.mrb[0].mxu0 %v432
        %v840 = vpop.f32.mrb[0].mxu0
        %v841 = vadd.f32 %v278, %v840
        %v842 = vpop.f32.mrb[0].mxu0
        %843 = vmatprep.mubr.f32.mxu0 0.0
        %844 = vmatmul.mubr.f32.gmra.mrb[0].mxu0 %v435
        %v845 = vpop.f32.mrb[0].mxu0
        %v846 = vadd.f32 %v278, %v845
        %v847 = vpop.f32.mrb[0].mxu0
        %848 = vmatprep.mubr.f32.mxu0 0.0
        %849 = vmatmul.mubr.f32.gmra.mrb[0].mxu0 %v438
        %v850 = vpop.f32.mrb[0].mxu0
        %v851 = vadd.f32 %v278, %v850
        %v852 = vpop.f32.mrb[0].mxu0
        %853 = vmatprep.mubr.f32.mxu0 0.0
        %854 = vmatmul.mubr.f32.gmra.mrb[0].mxu0 %v441
        %v855 = vpop.f32.mrb[0].mxu0
        %v856 = vadd.f32 %v278, %v855
        %v857 = vpop.f32.mrb[0].mxu0
        %858 = vmatprep.mubr.f32.mxu0 0.0
        %859 = vmatmul.mubr.f32.gmra.mrb[0].mxu0 %v444
        %v860 = vpop.f32.mrb[0].mxu0
        %v861 = vadd.f32 %v278, %v860
        %v862 = vpop.f32.mrb[0].mxu0
        %863 = vmatprep.mubr.f32.mxu0 0.0
        %864 = vmatmul.mubr.f32.gmra.mrb[0].mxu0 %v447
        %v865 = vpop.f32.mrb[0].mxu0
        %v866 = vadd.f32 %v278, %v865
        %v867 = vpop.f32.mrb[0].mxu0
        %868 = vmatprep.mubr.f32.mxu0 0.0
        %869 = vmatmul.mubr.f32.gmra.mrb[0].mxu0 %v450
        %v870 = vpop.f32.mrb[0].mxu0
        %v871 = vadd.f32 %v278, %v870
        %v872 = vpop.f32.mrb[0].mxu0
        %873 = vmatprep.mubr.f32.mxu0 0.0
        %874 = vmatmul.mubr.f32.gmra.mrb[0].mxu0 %v453
        %v875 = vpop.f32.mrb[0].mxu0
        %v876 = vadd.f32 %v278, %v875
        %v877 = vpop.f32.mrb[0].mxu0
        %878 = vmatprep.mubr.f32.mxu0 0.0
        %879 = vmatmul.mubr.f32.gmra.mrb[0].mxu0 %v456
        %v880 = vpop.f32.mrb[0].mxu0
        %v881 = vadd.f32 %v278, %v880
        %v882 = vpop.f32.mrb[0].mxu0
        %883 = vmatprep.mubr.f32.mxu0 0.0
        %884 = vmatmul.mubr.f32.gmra.mrb[0].mxu0 %v459
        %v885 = vpop.f32.mrb[0].mxu0
        %v886 = vadd.f32 %v278, %v885
        %v887 = vpop.f32.mrb[0].mxu0
        %888 = vmatprep.mubr.f32.mxu0 0.0
        %889 = vmatmul.mubr.f32.gmra.mrb[0].mxu0 %v462
        %v890 = vpop.f32.mrb[0].mxu0
        %v891 = vadd.f32 %v278, %v890
        %v892 = vpop.f32.mrb[0].mxu0
        %893 = vmatprep.mubr.f32.mxu0 0.0
        %894 = vmatmul.mubr.f32.gmra.mrb[0].mxu0 %v465
        %v895 = vpop.f32.mrb[0].mxu0
        %v896 = vadd.f32 %v278, %v895
        %v897 = vpop.f32.mrb[0].mxu0
        %898 = vmatprep.mubr.f32.mxu0 0.0
        %899 = vmatmul.mubr.f32.gmra.mrb[0].mxu0 %v468
        %v900 = vpop.f32.mrb[0].mxu0
        %v901 = vadd.f32 %v278, %v900
        %v902 = vpop.f32.mrb[0].mxu0
        %903 = vmatprep.mubr.f32.mxu0 0.0
        %904 = vmatmul.mubr.f32.gmra.mrb[0].mxu0 %v471
        %v905 = vpop.f32.mrb[0].mxu0
        %v906 = vadd.f32 %v278, %v905
        %v907 = vpop.f32.mrb[0].mxu0
        %908 = vmatprep.mubr.f32.mxu0 0.0
        %909 = vmatmul.mubr.f32.gmra.mrb[0].mxu0 %v474
        %v910 = vpop.f32.mrb[0].mxu0
        %v911 = vadd.f32 %v278, %v910
        %v912 = vpop.f32.mrb[0].mxu0
        %913 = vmatprep.mubr.f32.mxu0 0.0
        %914 = vmatmul.mubr.f32.gmra.mrb[0].mxu0 %v477
        %v915 = vpop.f32.mrb[0].mxu0
        %v916 = vadd.f32 %v278, %v915
        %v917 = vpop.f32.mrb[0].mxu0
        %918 = vmatprep.mubr.f32.mxu0 0.0
        %919 = vmatmul.mubr.f32.gmra.mrb[0].mxu0 %v480
        %v920 = vpop.f32.mrb[0].mxu0
        %v921 = vadd.f32 %v278, %v920
        %v922 = vpop.f32.mrb[0].mxu0
        %923 = vmatprep.mubr.f32.mxu0 0.0
        %924 = vmatmul.mubr.f32.gmra.mrb[0].mxu0 %v483
        %v925 = vpop.f32.mrb[0].mxu0
        %v926 = vadd.f32 %v278, %v925
        %v927 = vpop.f32.mrb[0].mxu0
        %928 = vmatprep.mubr.f32.mxu0 0.0
        %929 = vmatmul.mubr.f32.gmra.mrb[0].mxu0 %v486
        %v930 = vpop.f32.mrb[0].mxu0
        %v931 = vadd.f32 %v278, %v930
        %v932 = vpop.f32.mrb[0].mxu0
        %933 = vmatprep.mubr.f32.mxu0 0.0
        %934 = vmatmul.mubr.f32.gmra.mrb[0].mxu0 %v489
        %v935 = vpop.f32.mrb[0].mxu0
        %v936 = vadd.f32 %v278, %v935
        %v937 = vpop.f32.mrb[0].mxu0
        %938 = vmatprep.mubr.f32.mxu0 0.0
        %939 = vmatmul.mubr.f32.gmra.mrb[0].mxu0 %v492
        %v940 = vpop.f32.mrb[0].mxu0
        %v941 = vadd.f32 %v278, %v940
        %v942 = vpop.f32.mrb[0].mxu0
        %943 = vmatprep.mubr.f32.mxu0 0.0
        %944 = vmatmul.mubr.f32.gmra.mrb[0].mxu0 %v495
        %v945 = vpop.f32.mrb[0].mxu0
        %v946 = vadd.f32 %v278, %v945
        %v947 = vpop.f32.mrb[0].mxu0
        %948 = vmatprep.mubr.f32.mxu0 0.0
        %949 = vmatmul.mubr.f32.gmra.mrb[0].mxu0 %v498
        %v950 = vpop.f32.mrb[0].mxu0
        %v951 = vadd.f32 %v278, %v950
        %v952 = vpop.f32.mrb[0].mxu0
        %953 = vmatprep.mubr.f32.mxu0 0.0
        %954 = vmatmul.mubr.f32.gmra.mrb[0].mxu0 %v501
        %v955 = vpop.f32.mrb[0].mxu0
        %v956 = vadd.f32 %v278, %v955
        %v957 = vpop.f32.mrb[0].mxu0
        %958 = vmatprep.mubr.f32.mxu0 0.0
        %959 = vmatmul.mubr.f32.gmra.mrb[0].mxu0 %v504
        %v960 = vpop.f32.mrb[0].mxu0
        %v961 = vadd.f32 %v278, %v960
        %v962 = vpop.f32.mrb[0].mxu0
        %963 = vmatprep.mubr.f32.mxu0 0.0
        %964 = vmatmul.mubr.f32.gmra.mrb[0].mxu0 %v507
        %v965 = vpop.f32.mrb[0].mxu0
        %v966 = vadd.f32 %v278, %v965
        %v967 = vpop.f32.mrb[0].mxu0
        %968 = vmatprep.mubr.f32.mxu0 0.0
        %969 = vmatmul.mubr.f32.gmra.mrb[0].mxu0 %v510
        %v970 = vpop.f32.mrb[0].mxu0
        %v971 = vadd.f32 %v278, %v970
        %v972 = vpop.f32.mrb[0].mxu0
        %973 = vmatprep.mubr.f32.mxu0 0.0
        %974 = vmatmul.mubr.f32.gmra.mrb[0].mxu0 %v513
        %v975 = vpop.f32.mrb[0].mxu0
        %v976 = vadd.f32 %v278, %v975
        %v977 = vpop.f32.mrb[0].mxu0
        %978 = vmatprep.mubr.f32.mxu0 0.0
        %979 = vmatmul.mubr.f32.gmra.mrb[0].mxu0 %v516
        %v980 = vpop.f32.mrb[0].mxu0
        %v981 = vadd.f32 %v278, %v980
        %v982 = vpop.f32.mrb[0].mxu0
        %983 = vmatprep.mubr.f32.mxu0 0.0
        %984 = vmatmul.mubr.f32.gmra.mrb[0].mxu0 %v519
        %v985 = vpop.f32.mrb[0].mxu0
        %v986 = vadd.f32 %v278, %v985
        %v987 = vpop.f32.mrb[0].mxu0
        %988 = vdwg.mxu0
        %vm989 = vcmask 15360
        %990 = vst.msk [vmem:[%s172] sm:$0xff] %vm989, %v591
        %991 = vst.msk [vmem:[%s172 + $0x8] sm:$0xff] %vm989, %v596
        %992 = vst.msk [vmem:[%s172 + $0x10] sm:$0xff] %vm989, %v601
        %993 = vst.msk [vmem:[%s172 + $0x18] sm:$0xff] %vm989, %v606
        %994 = vst.msk [vmem:[%s172 + $0x20] sm:$0xff] %vm989, %v611
        %995 = vst.msk [vmem:[%s172 + $0x28] sm:$0xff] %vm989, %v616
        %996 = vst.msk [vmem:[%s172 + $0x30] sm:$0xff] %vm989, %v621
        %997 = vst.msk [vmem:[%s172 + $0x38] sm:$0xff] %vm989, %v626
        %998 = vst.msk [vmem:[%s172 + $0x40] sm:$0xff] %vm989, %v631
        %999 = vst.msk [vmem:[%s172 + $0x48] sm:$0xff] %vm989, %v636
        %1000 = vst.msk [vmem:[%s172 + $0x50] sm:$0xff] %vm989, %v641
        %1001 = vst.msk [vmem:[%s172 + $0x58] sm:$0xff] %vm989, %v646
        %1002 = vst.msk [vmem:[%s172 + $0x60] sm:$0xff] %vm989, %v651
        %1003 = vst.msk [vmem:[%s172 + $0x68] sm:$0xff] %vm989, %v656
        %1004 = vst.msk [vmem:[%s172 + $0x70] sm:$0xff] %vm989, %v661
        %1005 = vst.msk [vmem:[%s172 + $0x78] sm:$0xff] %vm989, %v666
        %1006 = vst.msk [vmem:[%s172 + $0x80] sm:$0xff] %vm989, %v671
        %1007 = vst.msk [vmem:[%s172 + $0x88] sm:$0xff] %vm989, %v676
        %1008 = vst.msk [vmem:[%s172 + $0x90] sm:$0xff] %vm989, %v681
        %1009 = vst.msk [vmem:[%s172 + $0x98] sm:$0xff] %vm989, %v686
        %1010 = vst.msk [vmem:[%s172 + $0xa0] sm:$0xff] %vm989, %v691
        %1011 = vst.msk [vmem:[%s172 + $0xa8] sm:$0xff] %vm989, %v696
        %1012 = vst.msk [vmem:[%s172 + $0xb0] sm:$0xff] %vm989, %v701
        %1013 = vst.msk [vmem:[%s172 + $0xb8] sm:$0xff] %vm989, %v706
        %1014 = vst.msk [vmem:[%s172 + $0xc0] sm:$0xff] %vm989, %v711
        %1015 = vst.msk [vmem:[%s172 + $0xc8] sm:$0xff] %vm989, %v716
        %1016 = vst.msk [vmem:[%s172 + $0xd0] sm:$0xff] %vm989, %v721
        %1017 = vst.msk [vmem:[%s172 + $0xd8] sm:$0xff] %vm989, %v726
        %1018 = vst.msk [vmem:[%s172 + $0xe0] sm:$0xff] %vm989, %v731
        %1019 = vst.msk [vmem:[%s172 + $0xe8] sm:$0xff] %vm989, %v736
        %1020 = vst.msk [vmem:[%s172 + $0xf0] sm:$0xff] %vm989, %v741
        %1021 = vst.msk [vmem:[%s172 + $0xf8] sm:$0xff] %vm989, %v746
        %1022 = vst.msk [vmem:[%s172 + $0x100] sm:$0xff] %vm989, %v751
        %1023 = vst.msk [vmem:[%s172 + $0x108] sm:$0xff] %vm989, %v756
        %1024 = vst.msk [vmem:[%s172 + $0x110] sm:$0xff] %vm989, %v761
        %1025 = vst.msk [vmem:[%s172 + $0x118] sm:$0xff] %vm989, %v766
        %1026 = vst.msk [vmem:[%s172 + $0x120] sm:$0xff] %vm989, %v771
        %1027 = vst.msk [vmem:[%s172 + $0x128] sm:$0xff] %vm989, %v776
        %1028 = vst.msk [vmem:[%s172 + $0x130] sm:$0xff] %vm989, %v781
        %1029 = vst.msk [vmem:[%s172 + $0x138] sm:$0xff] %vm989, %v786
        %1030 = vst.msk [vmem:[%s172 + $0x140] sm:$0xff] %vm989, %v791
        %1031 = vst.msk [vmem:[%s172 + $0x148] sm:$0xff] %vm989, %v796
        %1032 = vst.msk [vmem:[%s172 + $0x150] sm:$0xff] %vm989, %v801
        %1033 = vst.msk [vmem:[%s172 + $0x158] sm:$0xff] %vm989, %v806
        %1034 = vst.msk [vmem:[%s172 + $0x160] sm:$0xff] %vm989, %v811
        %1035 = vst.msk [vmem:[%s172 + $0x168] sm:$0xff] %vm989, %v816
        %1036 = vst.msk [vmem:[%s172 + $0x170] sm:$0xff] %vm989, %v821
        %1037 = vst.msk [vmem:[%s172 + $0x178] sm:$0xff] %vm989, %v826
        %1038 = vst.msk [vmem:[%s172 + $0x180] sm:$0xff] %vm989, %v831
        %1039 = vst.msk [vmem:[%s172 + $0x188] sm:$0xff] %vm989, %v836
        %1040 = vst.msk [vmem:[%s172 + $0x190] sm:$0xff] %vm989, %v841
        %1041 = vst.msk [vmem:[%s172 + $0x198] sm:$0xff] %vm989, %v846
        %1042 = vst.msk [vmem:[%s172 + $0x1a0] sm:$0xff] %vm989, %v851
        %1043 = vst.msk [vmem:[%s172 + $0x1a8] sm:$0xff] %vm989, %v856
        %1044 = vst.msk [vmem:[%s172 + $0x1b0] sm:$0xff] %vm989, %v861
        %1045 = vst.msk [vmem:[%s172 + $0x1b8] sm:$0xff] %vm989, %v866
        %1046 = vst.msk [vmem:[%s172 + $0x1c0] sm:$0xff] %vm989, %v871
        %1047 = vst.msk [vmem:[%s172 + $0x1c8] sm:$0xff] %vm989, %v876
        %1048 = vst.msk [vmem:[%s172 + $0x1d0] sm:$0xff] %vm989, %v881
        %1049 = vst.msk [vmem:[%s172 + $0x1d8] sm:$0xff] %vm989, %v886
        %1050 = vst.msk [vmem:[%s172 + $0x1e0] sm:$0xff] %vm989, %v891
        %1051 = vst.msk [vmem:[%s172 + $0x1e8] sm:$0xff] %vm989, %v896
        %1052 = vst.msk [vmem:[%s172 + $0x1f0] sm:$0xff] %vm989, %v901
        %1053 = vst.msk [vmem:[%s172 + $0x1f8] sm:$0xff] %vm989, %v906
        %1054 = vst.msk [vmem:[%s172 + $0x200] sm:$0xff] %vm989, %v911
        %1055 = vst.msk [vmem:[%s172 + $0x208] sm:$0xff] %vm989, %v916
        %1056 = vst.msk [vmem:[%s172 + $0x210] sm:$0xff] %vm989, %v921
        %1057 = vst.msk [vmem:[%s172 + $0x218] sm:$0xff] %vm989, %v926
        %1058 = vst.msk [vmem:[%s172 + $0x220] sm:$0xff] %vm989, %v931
        %1059 = vst.msk [vmem:[%s172 + $0x228] sm:$0xff] %vm989, %v936
        %1060 = vst.msk [vmem:[%s172 + $0x230] sm:$0xff] %vm989, %v941
        %1061 = vst.msk [vmem:[%s172 + $0x238] sm:$0xff] %vm989, %v946
        %1062 = vst.msk [vmem:[%s172 + $0x240] sm:$0xff] %vm989, %v951
        %1063 = vst.msk [vmem:[%s172 + $0x248] sm:$0xff] %vm989, %v956
        %1064 = vst.msk [vmem:[%s172 + $0x250] sm:$0xff] %vm989, %v961
        %1065 = vst.msk [vmem:[%s172 + $0x258] sm:$0xff] %vm989, %v966
        %1066 = vst.msk [vmem:[%s172 + $0x260] sm:$0xff] %vm989, %v971
        %1067 = vst.msk [vmem:[%s172 + $0x268] sm:$0xff] %vm989, %v976
        %1068 = vst.msk [vmem:[%s172 + $0x270] sm:$0xff] %vm989, %v981
        %1069 = vst.msk [vmem:[%s172 + $0x278] sm:$0xff] %vm989, %v986
        %s1070 = sand.u32 %s90, 1
        %s1071 = sand.u32 %s90, 1
        %s1072 = smul.addr %s1071, 640
        %s1073 = scalar_lea.vmem [#allocation2], %s1072
        // Predicated region
        $region33: #{tpu_custom_call.1} parent=31 // pred_check
          %p1074 = pneg %p100
        $region34: #{tpu_custom_call.1} parent=31 // pred_check_branch
          %1076 = sbr.rel (%p1074) target = $region36
        $region35: #{tpu_custom_call.1} parent=31 // pred_region
          %s1077 = smul.u32 80, %s14
          %s1078 = ssub.s32 257, %s1077
          %p1079 = scmp.lt.s32.totalorder %s1078, 80
          %s1080 = scalar_select %p1079, %s1078, 80
          %s1081 = smul.u32 128, %s1080
          %p1082 = scmp.ne.s32.totalorder 0, %s1081
          %s1083 = smul.addr %s1077, 8
          %s1084 = scalar_lea.vmem %s3, %s1083
          // Predicated region
          $region37: #{tpu_custom_call.1} parent=35 // pred_check
            %p1085 = pneg %p1082
          $region38: #{tpu_custom_call.1} parent=35 // pred_check_branch
            %1087 = sbr.rel (%p1085) target = $region40
          $region39: #{tpu_custom_call.1} parent=35 // pred_region
            // Predicated region
            $region41: #{tpu_custom_call.1} parent=39 // pred_check
              _
            $region42: #{tpu_custom_call.1} parent=39 // pred_check_branch
              %1089 = sbr.rel (0) target = $region44
            $region43: #{tpu_custom_call.1} parent=39 // pred_region
              // Predicated region
              $region63: #{tpu_custom_call.1} parent=43 // pred_check
                _
              $region64: #{tpu_custom_call.1} parent=43 // pred_check_branch
                %1264 = sbr.rel (0) target = $region66
              $region65: #{tpu_custom_call.1} parent=43 // pred_region
                %s1265 = sshrl.u32 %s1080, 6
                // While loop
                $region67: #{tpu_custom_call.1} parent=65 // loop_pre_header
                  _
                $region68: #{tpu_custom_call.1} parent=65 // loop_header
                  %s1267 = sphi 0, %s1269
                  %p1268 = scmp.ge.s32.totalorder %s1267, %s1265
                  %s1272 = sphi 0, %s1405
                  %s1273 = sphi %s1073, %s1408
                  %s1274 = sphi %s1084, %s1409
                $region69: #{tpu_custom_call.1} parent=65 // loop_header_branch
                  %1271 = sbr.rel (%p1268) target = $region73
                $region70: #{tpu_custom_call.1} parent=65 // loop_body
                  %v1275 = vld [vmem:[%s1273] sm:$0xff]
                  %1276 = vst [vmem:[%s1274] sm:$0xff] %v1275
                  %v1277 = vld [vmem:[%s1273 + $0x8] sm:$0xff]
                  %1278 = vst [vmem:[%s1274 + $0x8] sm:$0xff] %v1277
                  %v1279 = vld [vmem:[%s1273 + $0x10] sm:$0xff]
                  %1280 = vst [vmem:[%s1274 + $0x10] sm:$0xff] %v1279
                  %v1281 = vld [vmem:[%s1273 + $0x18] sm:$0xff]
                  %1282 = vst [vmem:[%s1274 + $0x18] sm:$0xff] %v1281
                  %v1283 = vld [vmem:[%s1273 + $0x20] sm:$0xff]
                  %1284 = vst [vmem:[%s1274 + $0x20] sm:$0xff] %v1283
                  %v1285 = vld [vmem:[%s1273 + $0x28] sm:$0xff]
                  %1286 = vst [vmem:[%s1274 + $0x28] sm:$0xff] %v1285
                  %v1287 = vld [vmem:[%s1273 + $0x30] sm:$0xff]
                  %1288 = vst [vmem:[%s1274 + $0x30] sm:$0xff] %v1287
                  %v1289 = vld [vmem:[%s1273 + $0x38] sm:$0xff]
                  %1290 = vst [vmem:[%s1274 + $0x38] sm:$0xff] %v1289
                  %v1291 = vld [vmem:[%s1273 + $0x40] sm:$0xff]
                  %1292 = vst [vmem:[%s1274 + $0x40] sm:$0xff] %v1291
                  %v1293 = vld [vmem:[%s1273 + $0x48] sm:$0xff]
                  %1294 = vst [vmem:[%s1274 + $0x48] sm:$0xff] %v1293
                  %v1295 = vld [vmem:[%s1273 + $0x50] sm:$0xff]
                  %1296 = vst [vmem:[%s1274 + $0x50] sm:$0xff] %v1295
                  %v1297 = vld [vmem:[%s1273 + $0x58] sm:$0xff]
                  %1298 = vst [vmem:[%s1274 + $0x58] sm:$0xff] %v1297
                  %v1299 = vld [vmem:[%s1273 + $0x60] sm:$0xff]
                  %1300 = vst [vmem:[%s1274 + $0x60] sm:$0xff] %v1299
                  %v1301 = vld [vmem:[%s1273 + $0x68] sm:$0xff]
                  %1302 = vst [vmem:[%s1274 + $0x68] sm:$0xff] %v1301
                  %v1303 = vld [vmem:[%s1273 + $0x70] sm:$0xff]
                  %1304 = vst [vmem:[%s1274 + $0x70] sm:$0xff] %v1303
                  %v1305 = vld [vmem:[%s1273 + $0x78] sm:$0xff]
                  %1306 = vst [vmem:[%s1274 + $0x78] sm:$0xff] %v1305
                  %v1307 = vld [vmem:[%s1273 + $0x80] sm:$0xff]
                  %1308 = vst [vmem:[%s1274 + $0x80] sm:$0xff] %v1307
                  %v1309 = vld [vmem:[%s1273 + $0x88] sm:$0xff]
                  %1310 = vst [vmem:[%s1274 + $0x88] sm:$0xff] %v1309
                  %v1311 = vld [vmem:[%s1273 + $0x90] sm:$0xff]
                  %1312 = vst [vmem:[%s1274 + $0x90] sm:$0xff] %v1311
                  %v1313 = vld [vmem:[%s1273 + $0x98] sm:$0xff]
                  %1314 = vst [vmem:[%s1274 + $0x98] sm:$0xff] %v1313
                  %v1315 = vld [vmem:[%s1273 + $0xa0] sm:$0xff]
                  %1316 = vst [vmem:[%s1274 + $0xa0] sm:$0xff] %v1315
                  %v1317 = vld [vmem:[%s1273 + $0xa8] sm:$0xff]
                  %1318 = vst [vmem:[%s1274 + $0xa8] sm:$0xff] %v1317
                  %v1319 = vld [vmem:[%s1273 + $0xb0] sm:$0xff]
                  %1320 = vst [vmem:[%s1274 + $0xb0] sm:$0xff] %v1319
                  %v1321 = vld [vmem:[%s1273 + $0xb8] sm:$0xff]
                  %1322 = vst [vmem:[%s1274 + $0xb8] sm:$0xff] %v1321
                  %v1323 = vld [vmem:[%s1273 + $0xc0] sm:$0xff]
                  %1324 = vst [vmem:[%s1274 + $0xc0] sm:$0xff] %v1323
                  %v1325 = vld [vmem:[%s1273 + $0xc8] sm:$0xff]
                  %1326 = vst [vmem:[%s1274 + $0xc8] sm:$0xff] %v1325
                  %v1327 = vld [vmem:[%s1273 + $0xd0] sm:$0xff]
                  %1328 = vst [vmem:[%s1274 + $0xd0] sm:$0xff] %v1327
                  %v1329 = vld [vmem:[%s1273 + $0xd8] sm:$0xff]
                  %1330 = vst [vmem:[%s1274 + $0xd8] sm:$0xff] %v1329
                  %v1331 = vld [vmem:[%s1273 + $0xe0] sm:$0xff]
                  %1332 = vst [vmem:[%s1274 + $0xe0] sm:$0xff] %v1331
                  %v1333 = vld [vmem:[%s1273 + $0xe8] sm:$0xff]
                  %1334 = vst [vmem:[%s1274 + $0xe8] sm:$0xff] %v1333
                  %v1335 = vld [vmem:[%s1273 + $0xf0] sm:$0xff]
                  %1336 = vst [vmem:[%s1274 + $0xf0] sm:$0xff] %v1335
                  %v1337 = vld [vmem:[%s1273 + $0xf8] sm:$0xff]
                  %1338 = vst [vmem:[%s1274 + $0xf8] sm:$0xff] %v1337
                  %v1339 = vld [vmem:[%s1273 + $0x100] sm:$0xff]
                  %1340 = vst [vmem:[%s1274 + $0x100] sm:$0xff] %v1339
                  %v1341 = vld [vmem:[%s1273 + $0x108] sm:$0xff]
                  %1342 = vst [vmem:[%s1274 + $0x108] sm:$0xff] %v1341
                  %v1343 = vld [vmem:[%s1273 + $0x110] sm:$0xff]
                  %1344 = vst [vmem:[%s1274 + $0x110] sm:$0xff] %v1343
                  %v1345 = vld [vmem:[%s1273 + $0x118] sm:$0xff]
                  %1346 = vst [vmem:[%s1274 + $0x118] sm:$0xff] %v1345
                  %v1347 = vld [vmem:[%s1273 + $0x120] sm:$0xff]
                  %1348 = vst [vmem:[%s1274 + $0x120] sm:$0xff] %v1347
                  %v1349 = vld [vmem:[%s1273 + $0x128] sm:$0xff]
                  %1350 = vst [vmem:[%s1274 + $0x128] sm:$0xff] %v1349
                  %v1351 = vld [vmem:[%s1273 + $0x130] sm:$0xff]
                  %1352 = vst [vmem:[%s1274 + $0x130] sm:$0xff] %v1351
                  %v1353 = vld [vmem:[%s1273 + $0x138] sm:$0xff]
                  %1354 = vst [vmem:[%s1274 + $0x138] sm:$0xff] %v1353
                  %v1355 = vld [vmem:[%s1273 + $0x140] sm:$0xff]
                  %1356 = vst [vmem:[%s1274 + $0x140] sm:$0xff] %v1355
                  %v1357 = vld [vmem:[%s1273 + $0x148] sm:$0xff]
                  %1358 = vst [vmem:[%s1274 + $0x148] sm:$0xff] %v1357
                  %v1359 = vld [vmem:[%s1273 + $0x150] sm:$0xff]
                  %1360 = vst [vmem:[%s1274 + $0x150] sm:$0xff] %v1359
                  %v1361 = vld [vmem:[%s1273 + $0x158] sm:$0xff]
                  %1362 = vst [vmem:[%s1274 + $0x158] sm:$0xff] %v1361
                  %v1363 = vld [vmem:[%s1273 + $0x160] sm:$0xff]
                  %1364 = vst [vmem:[%s1274 + $0x160] sm:$0xff] %v1363
                  %v1365 = vld [vmem:[%s1273 + $0x168] sm:$0xff]
                  %1366 = vst [vmem:[%s1274 + $0x168] sm:$0xff] %v1365
                  %v1367 = vld [vmem:[%s1273 + $0x170] sm:$0xff]
                  %1368 = vst [vmem:[%s1274 + $0x170] sm:$0xff] %v1367
                  %v1369 = vld [vmem:[%s1273 + $0x178] sm:$0xff]
                  %1370 = vst [vmem:[%s1274 + $0x178] sm:$0xff] %v1369
                  %v1371 = vld [vmem:[%s1273 + $0x180] sm:$0xff]
                  %1372 = vst [vmem:[%s1274 + $0x180] sm:$0xff] %v1371
                  %v1373 = vld [vmem:[%s1273 + $0x188] sm:$0xff]
                  %1374 = vst [vmem:[%s1274 + $0x188] sm:$0xff] %v1373
                  %v1375 = vld [vmem:[%s1273 + $0x190] sm:$0xff]
                  %1376 = vst [vmem:[%s1274 + $0x190] sm:$0xff] %v1375
                  %v1377 = vld [vmem:[%s1273 + $0x198] sm:$0xff]
                  %1378 = vst [vmem:[%s1274 + $0x198] sm:$0xff] %v1377
                  %v1379 = vld [vmem:[%s1273 + $0x1a0] sm:$0xff]
                  %1380 = vst [vmem:[%s1274 + $0x1a0] sm:$0xff] %v1379
                  %v1381 = vld [vmem:[%s1273 + $0x1a8] sm:$0xff]
                  %1382 = vst [vmem:[%s1274 + $0x1a8] sm:$0xff] %v1381
                  %v1383 = vld [vmem:[%s1273 + $0x1b0] sm:$0xff]
                  %1384 = vst [vmem:[%s1274 + $0x1b0] sm:$0xff] %v1383
                  %v1385 = vld [vmem:[%s1273 + $0x1b8] sm:$0xff]
                  %1386 = vst [vmem:[%s1274 + $0x1b8] sm:$0xff] %v1385
                  %v1387 = vld [vmem:[%s1273 + $0x1c0] sm:$0xff]
                  %1388 = vst [vmem:[%s1274 + $0x1c0] sm:$0xff] %v1387
                  %v1389 = vld [vmem:[%s1273 + $0x1c8] sm:$0xff]
                  %1390 = vst [vmem:[%s1274 + $0x1c8] sm:$0xff] %v1389
                  %v1391 = vld [vmem:[%s1273 + $0x1d0] sm:$0xff]
                  %1392 = vst [vmem:[%s1274 + $0x1d0] sm:$0xff] %v1391
                  %v1393 = vld [vmem:[%s1273 + $0x1d8] sm:$0xff]
                  %1394 = vst [vmem:[%s1274 + $0x1d8] sm:$0xff] %v1393
                  %v1395 = vld [vmem:[%s1273 + $0x1e0] sm:$0xff]
                  %1396 = vst [vmem:[%s1274 + $0x1e0] sm:$0xff] %v1395
                  %v1397 = vld [vmem:[%s1273 + $0x1e8] sm:$0xff]
                  %1398 = vst [vmem:[%s1274 + $0x1e8] sm:$0xff] %v1397
                  %v1399 = vld [vmem:[%s1273 + $0x1f0] sm:$0xff]
                  %1400 = vst [vmem:[%s1274 + $0x1f0] sm:$0xff] %v1399
                  %v1401 = vld [vmem:[%s1273 + $0x1f8] sm:$0xff]
                  %1402 = vst [vmem:[%s1274 + $0x1f8] sm:$0xff] %v1401
                  %s1403 = sadd.s32 1, %s1272
                  %p1404 = scmp.ge.s32.totalorder %s1403, %s1265
                  %s1405 = scalar_select %p1404, 0, %s1403
                  %s1406 = smul.u32 %s1405, 512
                  %s1407 = smul.u32 %s1405, 512
                  %s1408 = scalar_lea.vmem %s1073, %s1406 [#allocation2]
                  %s1409 = scalar_lea.vmem %s1084, %s1407
                $region71: #{tpu_custom_call.1} parent=65 // loop_footer
                  %s1269 = sadd.s32 %s1267, 1
                $region72: #{tpu_custom_call.1} parent=65 // loop_footer_branch
                  %1266 = sbr.rel target = $region68
                $region73: #{tpu_custom_call.1} parent=65 // loop_exit
                  _
                %s1410 = sshrl.u32 %s1080, 6
                %s1411 = sand.u32 %s1080, 63
                %s1412 = smul.u32 %s1410, 64
                %s1413 = smul.u32 8, %s1412
                %s1414 = scalar_lea.vmem %s1073, %s1413 [#allocation2]
                %s1415 = smul.u32 8, %s1412
                %s1416 = scalar_lea.vmem %s1084, %s1415
                // While loop
                $region74: #{tpu_custom_call.1} parent=65 // loop_pre_header
                  _
                $region75: #{tpu_custom_call.1} parent=65 // loop_header
                  %s1418 = sphi 0, %s1420
                  %p1419 = scmp.ge.s32.totalorder %s1418, %s1411
                  %s1423 = sphi 0, %s1430
                  %s1424 = sphi %s1414, %s1433
                  %s1425 = sphi %s1416, %s1434
                $region76: #{tpu_custom_call.1} parent=65 // loop_header_branch
                  %1422 = sbr.rel (%p1419) target = $region80
                $region77: #{tpu_custom_call.1} parent=65 // loop_body
                  %v1426 = vld [vmem:[%s1424] sm:$0xff]
                  %1427 = vst [vmem:[%s1425] sm:$0xff] %v1426
                  %s1428 = sadd.s32 1, %s1423
                  %p1429 = scmp.ge.s32.totalorder %s1428, %s1411
                  %s1430 = scalar_select %p1429, 0, %s1428
                  %s1431 = smul.u32 %s1430, 8
                  %s1432 = smul.u32 %s1430, 8
                  %s1433 = scalar_lea.vmem %s1414, %s1431 [#allocation2]
                  %s1434 = scalar_lea.vmem %s1416, %s1432
                $region78: #{tpu_custom_call.1} parent=65 // loop_footer
                  %s1420 = sadd.s32 %s1418, 1
                $region79: #{tpu_custom_call.1} parent=65 // loop_footer_branch
                  %1417 = sbr.rel target = $region75
                $region80: #{tpu_custom_call.1} parent=65 // loop_exit
                  _
              $region66: #{tpu_custom_call.1} parent=43 // pred_fallthru
                _
              // Predicated region
              $region81: #{tpu_custom_call.1} parent=43 // pred_check
                _
              $region82: #{tpu_custom_call.1} parent=43 // pred_check_branch
                %1436 = sbr.rel target = $region84
              $region83: #{tpu_custom_call.1} parent=43 // pred_region
                _
              $region84: #{tpu_custom_call.1} parent=43 // pred_fallthru
                _
            $region44: #{tpu_custom_call.1} parent=39 // pred_fallthru
              _
            // Predicated region
            $region45: #{tpu_custom_call.1} parent=39 // pred_check
              _
            $region46: #{tpu_custom_call.1} parent=39 // pred_check_branch
              %1091 = sbr.rel target = $region48
            $region47: #{tpu_custom_call.1} parent=39 // pred_region
              %s1093 = sshrl.u32 %s1080, 6
              // While loop
              $region49: #{tpu_custom_call.1} parent=47 // loop_pre_header
                _
              $region50: #{tpu_custom_call.1} parent=47 // loop_header
                %s1095 = sphi 0, %s1097
                %p1096 = scmp.ge.s32.totalorder %s1095, %s1093
                %s1100 = sphi 0, %s1233
                %s1101 = sphi %s1073, %s1236
                %s1102 = sphi %s1084, %s1237
              $region51: #{tpu_custom_call.1} parent=47 // loop_header_branch
                %1099 = sbr.rel (%p1096) target = $region55
              $region52: #{tpu_custom_call.1} parent=47 // loop_body
                %v1103 = vld [vmem:[%s1101] sm:$0xff]
                %1104 = vst [vmem:[%s1102] sm:$0xff] %v1103
                %v1105 = vld [vmem:[%s1101 + $0x8] sm:$0xff]
                %1106 = vst [vmem:[%s1102 + $0x8] sm:$0xff] %v1105
                %v1107 = vld [vmem:[%s1101 + $0x10] sm:$0xff]
                %1108 = vst [vmem:[%s1102 + $0x10] sm:$0xff] %v1107
                %v1109 = vld [vmem:[%s1101 + $0x18] sm:$0xff]
                %1110 = vst [vmem:[%s1102 + $0x18] sm:$0xff] %v1109
                %v1111 = vld [vmem:[%s1101 + $0x20] sm:$0xff]
                %1112 = vst [vmem:[%s1102 + $0x20] sm:$0xff] %v1111
                %v1113 = vld [vmem:[%s1101 + $0x28] sm:$0xff]
                %1114 = vst [vmem:[%s1102 + $0x28] sm:$0xff] %v1113
                %v1115 = vld [vmem:[%s1101 + $0x30] sm:$0xff]
                %1116 = vst [vmem:[%s1102 + $0x30] sm:$0xff] %v1115
                %v1117 = vld [vmem:[%s1101 + $0x38] sm:$0xff]
                %1118 = vst [vmem:[%s1102 + $0x38] sm:$0xff] %v1117
                %v1119 = vld [vmem:[%s1101 + $0x40] sm:$0xff]
                %1120 = vst [vmem:[%s1102 + $0x40] sm:$0xff] %v1119
                %v1121 = vld [vmem:[%s1101 + $0x48] sm:$0xff]
                %1122 = vst [vmem:[%s1102 + $0x48] sm:$0xff] %v1121
                %v1123 = vld [vmem:[%s1101 + $0x50] sm:$0xff]
                %1124 = vst [vmem:[%s1102 + $0x50] sm:$0xff] %v1123
                %v1125 = vld [vmem:[%s1101 + $0x58] sm:$0xff]
                %1126 = vst [vmem:[%s1102 + $0x58] sm:$0xff] %v1125
                %v1127 = vld [vmem:[%s1101 + $0x60] sm:$0xff]
                %1128 = vst [vmem:[%s1102 + $0x60] sm:$0xff] %v1127
                %v1129 = vld [vmem:[%s1101 + $0x68] sm:$0xff]
                %1130 = vst [vmem:[%s1102 + $0x68] sm:$0xff] %v1129
                %v1131 = vld [vmem:[%s1101 + $0x70] sm:$0xff]
                %1132 = vst [vmem:[%s1102 + $0x70] sm:$0xff] %v1131
                %v1133 = vld [vmem:[%s1101 + $0x78] sm:$0xff]
                %1134 = vst [vmem:[%s1102 + $0x78] sm:$0xff] %v1133
                %v1135 = vld [vmem:[%s1101 + $0x80] sm:$0xff]
                %1136 = vst [vmem:[%s1102 + $0x80] sm:$0xff] %v1135
                %v1137 = vld [vmem:[%s1101 + $0x88] sm:$0xff]
                %1138 = vst [vmem:[%s1102 + $0x88] sm:$0xff] %v1137
                %v1139 = vld [vmem:[%s1101 + $0x90] sm:$0xff]
                %1140 = vst [vmem:[%s1102 + $0x90] sm:$0xff] %v1139
                %v1141 = vld [vmem:[%s1101 + $0x98] sm:$0xff]
                %1142 = vst [vmem:[%s1102 + $0x98] sm:$0xff] %v1141
                %v1143 = vld [vmem:[%s1101 + $0xa0] sm:$0xff]
                %1144 = vst [vmem:[%s1102 + $0xa0] sm:$0xff] %v1143
                %v1145 = vld [vmem:[%s1101 + $0xa8] sm:$0xff]
                %1146 = vst [vmem:[%s1102 + $0xa8] sm:$0xff] %v1145
                %v1147 = vld [vmem:[%s1101 + $0xb0] sm:$0xff]
                %1148 = vst [vmem:[%s1102 + $0xb0] sm:$0xff] %v1147
                %v1149 = vld [vmem:[%s1101 + $0xb8] sm:$0xff]
                %1150 = vst [vmem:[%s1102 + $0xb8] sm:$0xff] %v1149
                %v1151 = vld [vmem:[%s1101 + $0xc0] sm:$0xff]
                %1152 = vst [vmem:[%s1102 + $0xc0] sm:$0xff] %v1151
                %v1153 = vld [vmem:[%s1101 + $0xc8] sm:$0xff]
                %1154 = vst [vmem:[%s1102 + $0xc8] sm:$0xff] %v1153
                %v1155 = vld [vmem:[%s1101 + $0xd0] sm:$0xff]
                %1156 = vst [vmem:[%s1102 + $0xd0] sm:$0xff] %v1155
                %v1157 = vld [vmem:[%s1101 + $0xd8] sm:$0xff]
                %1158 = vst [vmem:[%s1102 + $0xd8] sm:$0xff] %v1157
                %v1159 = vld [vmem:[%s1101 + $0xe0] sm:$0xff]
                %1160 = vst [vmem:[%s1102 + $0xe0] sm:$0xff] %v1159
                %v1161 = vld [vmem:[%s1101 + $0xe8] sm:$0xff]
                %1162 = vst [vmem:[%s1102 + $0xe8] sm:$0xff] %v1161
                %v1163 = vld [vmem:[%s1101 + $0xf0] sm:$0xff]
                %1164 = vst [vmem:[%s1102 + $0xf0] sm:$0xff] %v1163
                %v1165 = vld [vmem:[%s1101 + $0xf8] sm:$0xff]
                %1166 = vst [vmem:[%s1102 + $0xf8] sm:$0xff] %v1165
                %v1167 = vld [vmem:[%s1101 + $0x100] sm:$0xff]
                %1168 = vst [vmem:[%s1102 + $0x100] sm:$0xff] %v1167
                %v1169 = vld [vmem:[%s1101 + $0x108] sm:$0xff]
                %1170 = vst [vmem:[%s1102 + $0x108] sm:$0xff] %v1169
                %v1171 = vld [vmem:[%s1101 + $0x110] sm:$0xff]
                %1172 = vst [vmem:[%s1102 + $0x110] sm:$0xff] %v1171
                %v1173 = vld [vmem:[%s1101 + $0x118] sm:$0xff]
                %1174 = vst [vmem:[%s1102 + $0x118] sm:$0xff] %v1173
                %v1175 = vld [vmem:[%s1101 + $0x120] sm:$0xff]
                %1176 = vst [vmem:[%s1102 + $0x120] sm:$0xff] %v1175
                %v1177 = vld [vmem:[%s1101 + $0x128] sm:$0xff]
                %1178 = vst [vmem:[%s1102 + $0x128] sm:$0xff] %v1177
                %v1179 = vld [vmem:[%s1101 + $0x130] sm:$0xff]
                %1180 = vst [vmem:[%s1102 + $0x130] sm:$0xff] %v1179
                %v1181 = vld [vmem:[%s1101 + $0x138] sm:$0xff]
                %1182 = vst [vmem:[%s1102 + $0x138] sm:$0xff] %v1181
                %v1183 = vld [vmem:[%s1101 + $0x140] sm:$0xff]
                %1184 = vst [vmem:[%s1102 + $0x140] sm:$0xff] %v1183
                %v1185 = vld [vmem:[%s1101 + $0x148] sm:$0xff]
                %1186 = vst [vmem:[%s1102 + $0x148] sm:$0xff] %v1185
                %v1187 = vld [vmem:[%s1101 + $0x150] sm:$0xff]
                %1188 = vst [vmem:[%s1102 + $0x150] sm:$0xff] %v1187
                %v1189 = vld [vmem:[%s1101 + $0x158] sm:$0xff]
                %1190 = vst [vmem:[%s1102 + $0x158] sm:$0xff] %v1189
                %v1191 = vld [vmem:[%s1101 + $0x160] sm:$0xff]
                %1192 = vst [vmem:[%s1102 + $0x160] sm:$0xff] %v1191
                %v1193 = vld [vmem:[%s1101 + $0x168] sm:$0xff]
                %1194 = vst [vmem:[%s1102 + $0x168] sm:$0xff] %v1193
                %v1195 = vld [vmem:[%s1101 + $0x170] sm:$0xff]
                %1196 = vst [vmem:[%s1102 + $0x170] sm:$0xff] %v1195
                %v1197 = vld [vmem:[%s1101 + $0x178] sm:$0xff]
                %1198 = vst [vmem:[%s1102 + $0x178] sm:$0xff] %v1197
                %v1199 = vld [vmem:[%s1101 + $0x180] sm:$0xff]
                %1200 = vst [vmem:[%s1102 + $0x180] sm:$0xff] %v1199
                %v1201 = vld [vmem:[%s1101 + $0x188] sm:$0xff]
                %1202 = vst [vmem:[%s1102 + $0x188] sm:$0xff] %v1201
                %v1203 = vld [vmem:[%s1101 + $0x190] sm:$0xff]
                %1204 = vst [vmem:[%s1102 + $0x190] sm:$0xff] %v1203
                %v1205 = vld [vmem:[%s1101 + $0x198] sm:$0xff]
                %1206 = vst [vmem:[%s1102 + $0x198] sm:$0xff] %v1205
                %v1207 = vld [vmem:[%s1101 + $0x1a0] sm:$0xff]
                %1208 = vst [vmem:[%s1102 + $0x1a0] sm:$0xff] %v1207
                %v1209 = vld [vmem:[%s1101 + $0x1a8] sm:$0xff]
                %1210 = vst [vmem:[%s1102 + $0x1a8] sm:$0xff] %v1209
                %v1211 = vld [vmem:[%s1101 + $0x1b0] sm:$0xff]
                %1212 = vst [vmem:[%s1102 + $0x1b0] sm:$0xff] %v1211
                %v1213 = vld [vmem:[%s1101 + $0x1b8] sm:$0xff]
                %1214 = vst [vmem:[%s1102 + $0x1b8] sm:$0xff] %v1213
                %v1215 = vld [vmem:[%s1101 + $0x1c0] sm:$0xff]
                %1216 = vst [vmem:[%s1102 + $0x1c0] sm:$0xff] %v1215
                %v1217 = vld [vmem:[%s1101 + $0x1c8] sm:$0xff]
                %1218 = vst [vmem:[%s1102 + $0x1c8] sm:$0xff] %v1217
                %v1219 = vld [vmem:[%s1101 + $0x1d0] sm:$0xff]
                %1220 = vst [vmem:[%s1102 + $0x1d0] sm:$0xff] %v1219
                %v1221 = vld [vmem:[%s1101 + $0x1d8] sm:$0xff]
                %1222 = vst [vmem:[%s1102 + $0x1d8] sm:$0xff] %v1221
                %v1223 = vld [vmem:[%s1101 + $0x1e0] sm:$0xff]
                %1224 = vst [vmem:[%s1102 + $0x1e0] sm:$0xff] %v1223
                %v1225 = vld [vmem:[%s1101 + $0x1e8] sm:$0xff]
                %1226 = vst [vmem:[%s1102 + $0x1e8] sm:$0xff] %v1225
                %v1227 = vld [vmem:[%s1101 + $0x1f0] sm:$0xff]
                %1228 = vst [vmem:[%s1102 + $0x1f0] sm:$0xff] %v1227
                %v1229 = vld [vmem:[%s1101 + $0x1f8] sm:$0xff]
                %1230 = vst [vmem:[%s1102 + $0x1f8] sm:$0xff] %v1229
                %s1231 = sadd.s32 1, %s1100
                %p1232 = scmp.ge.s32.totalorder %s1231, %s1093
                %s1233 = scalar_select %p1232, 0, %s1231
                %s1234 = smul.u32 %s1233, 512
                %s1235 = smul.u32 %s1233, 512
                %s1236 = scalar_lea.vmem %s1073, %s1234 [#allocation2]
                %s1237 = scalar_lea.vmem %s1084, %s1235
              $region53: #{tpu_custom_call.1} parent=47 // loop_footer
                %s1097 = sadd.s32 %s1095, 1
              $region54: #{tpu_custom_call.1} parent=47 // loop_footer_branch
                %1094 = sbr.rel target = $region50
              $region55: #{tpu_custom_call.1} parent=47 // loop_exit
                _
              %s1238 = sshrl.u32 %s1080, 6
              %s1239 = sand.u32 %s1080, 63
              %s1240 = smul.u32 %s1238, 64
              %s1241 = smul.u32 8, %s1240
              %s1242 = scalar_lea.vmem %s1073, %s1241 [#allocation2]
              %s1243 = smul.u32 8, %s1240
              %s1244 = scalar_lea.vmem %s1084, %s1243
              // While loop
              $region56: #{tpu_custom_call.1} parent=47 // loop_pre_header
                _
              $region57: #{tpu_custom_call.1} parent=47 // loop_header
                %s1246 = sphi 0, %s1248
                %p1247 = scmp.ge.s32.totalorder %s1246, %s1239
                %s1251 = sphi 0, %s1258
                %s1252 = sphi %s1242, %s1261
                %s1253 = sphi %s1244, %s1262
              $region58: #{tpu_custom_call.1} parent=47 // loop_header_branch
                %1250 = sbr.rel (%p1247) target = $region62
              $region59: #{tpu_custom_call.1} parent=47 // loop_body
                %v1254 = vld [vmem:[%s1252] sm:$0xff]
                %1255 = vst [vmem:[%s1253] sm:$0xff] %v1254
                %s1256 = sadd.s32 1, %s1251
                %p1257 = scmp.ge.s32.totalorder %s1256, %s1239
                %s1258 = scalar_select %p1257, 0, %s1256
                %s1259 = smul.u32 %s1258, 8
                %s1260 = smul.u32 %s1258, 8
                %s1261 = scalar_lea.vmem %s1242, %s1259 [#allocation2]
                %s1262 = scalar_lea.vmem %s1244, %s1260
              $region60: #{tpu_custom_call.1} parent=47 // loop_footer
                %s1248 = sadd.s32 %s1246, 1
              $region61: #{tpu_custom_call.1} parent=47 // loop_footer_branch
                %1245 = sbr.rel target = $region57
              $region62: #{tpu_custom_call.1} parent=47 // loop_exit
                _
            $region48: #{tpu_custom_call.1} parent=39 // pred_fallthru
              _
          $region40: #{tpu_custom_call.1} parent=35 // pred_fallthru
            _
          %1437 = vnop
        $region36: #{tpu_custom_call.1} parent=31 // pred_fallthru
          _
      $region32: #{tpu_custom_call.1} parent=5 // pred_fallthru
        _
      %p1438 = scmp.le.s32.totalorder 2, %s9
      // Predicated region
      $region85: #{tpu_custom_call.1} parent=5 // pred_check
        %p1439 = pneg %p1438
      $region86: #{tpu_custom_call.1} parent=5 // pred_check_branch
        %1441 = sbr.rel (%p1439) target = $region88
      $region87: #{tpu_custom_call.1} parent=5 // pred_region
        %s1442 = ssub.s32 %s9, 2
        // Predicated region
        $region89: #{tpu_custom_call.1} parent=87 // pred_check
          %p1443 = pneg %p106
        $region90: #{tpu_custom_call.1} parent=87 // pred_check_branch
          %1445 = sbr.rel (%p1443) target = $region92
        $region91: #{tpu_custom_call.1} parent=87 // pred_region
          %s1446 = sand.u32 %s91, 1
          %s1447 = sand.u32 %s91, 1
          %s1448 = smul.addr %s1447, 640
          %s1449 = scalar_lea.vmem [#allocation2], %s1448
        $region92: #{tpu_custom_call.1} parent=87 // pred_fallthru
          _
      $region88: #{tpu_custom_call.1} parent=5 // pred_fallthru
        _
    $region6: #{tpu_custom_call.1} parent=1 // loop_footer
      %s13 = sadd.s32 1, %s9
    $region7: #{tpu_custom_call.1} parent=1 // loop_footer_branch
      %8 = sbr.rel target = $region3
    $region8: #{tpu_custom_call.1} parent=1 // loop_exit
      _

</llo_original>
